<compile_context>
chip_gen: v7x
topology: tpu7x:2x2x1
jax: 0.10.0
libtpu: 0.0.40
codegen_flags: <defaults>
</compile_context>

<pallas_src>
import functools

import jax
import jax.numpy as jnp
from jax.experimental import pallas as pl
from jax.experimental.pallas import tpu as pltpu


def _round_up(v, m):
    return ((v + m - 1) // m) * m


def _pad_to(a, axis, target):
    pad = target - a.shape[axis]
    if pad == 0:
        return a
    widths = [(0, 0)] * a.ndim
    widths[axis] = (0, pad)
    return jnp.pad(a, widths)


def _cheb_kernel(satT_ref, x_ref, chebT_ref, theta_ref, o_ref, *, K):
    """One (batch, row-tile) grid step.

    satT_ref : (1, TN, Np)           f32   row tile of S^T for this batch element
    x_ref    : (1, Np, F_in*T)       bf16  full graph signal, lanes = (f, t)
    chebT_ref: (K, TN, Np)           f32   row tile of every T_k^T (shared over batch)
    theta_ref: (K, F_in*T, F_out*T)  bf16  block-diagonal-over-T Theta_k (grid constant)
    o_ref    : (1, TN, F_out*T)      f32   lanes = (o, t)
    """
    s_t = satT_ref[0]                                   # (TN, Np) f32
    x = x_ref[0]                                        # (Np, F_in*T) bf16
    acc = jnp.zeros(o_ref.shape[1:], dtype=jnp.float32)  # (TN, F_out*T) f32 accumulator
    for k in range(K):                                  # K small & static -> unrolled
        # Spatial-attention weighting in f32 on the VPU, then bf16 into the MXU.
        a_k = (chebT_ref[k] * s_t).astype(jnp.bfloat16)             # (TN, Np)
        # Graph conv fused over all T: (T_k o S)^T @ X == (T_k^T o S^T) @ X.
        z_k = jnp.dot(a_k, x, preferred_element_type=jnp.float32)   # (TN, F_in*T) f32
        # Theta_k contraction over f; t rides along in the lanes (block-diag weight).
        acc = acc + jnp.dot(z_k.astype(jnp.bfloat16), theta_ref[k],
                            preferred_element_type=jnp.float32)     # (TN, F_out*T)
    o_ref[0] = jnp.maximum(acc, 0.0).astype(o_ref.dtype)


def _build_theta_blocks(theta, T):
    """theta: (K, F_in, F_out) -> (K, F_in*T, F_out*T), block-diagonal over T.

    big[k, f*T + t, o*T + t'] = theta[k, f, o] * delta(t, t')
    so one contract-lanes matmul applies Theta_k to every time step with no relayout.
    """
    K, F_in, F_out = theta.shape
    eye_t = jnp.eye(T, dtype=theta.dtype)
    big = theta[:, :, None, :, None] * eye_t[None, None, :, None, :]  # (K, F_in, T, F_out, T)
    return big.reshape(K, F_in * T, F_out * T)


def cheb_conv_with_sat(x, spatial_attention, cheb_polys, theta, *, row_tile=128):
    """
    x:                 (B, N, F_in, T)   float32  (PyTorch layout)
    spatial_attention: (B, N, N)         float32
    cheb_polys:        (K, N, N)         float32
    theta:             (K, F_in, F_out)  float32
    returns            (B, N, F_out, T)  float32  (PyTorch layout)
    """
    B, N, F_in, T = x.shape
    K, _, F_out = theta.shape

    # --- wrapper-side layout plumbing (cheap XLA ops; no in-kernel relayouts) ----------------
    n_pad = _round_up(N, row_tile)                 # zero rows/cols are inert, sliced off below

    x2 = x.reshape(B, N, F_in * T)                 # free reshape, lanes = (f, t)
    x2 = _pad_to(x2, 1, n_pad).astype(jnp.bfloat16)

    sat_t = _pad_to(_pad_to(jnp.swapaxes(spatial_attention, 1, 2), 1, n_pad), 2, n_pad)  # S^T, f32
    cheb_t = _pad_to(_pad_to(jnp.swapaxes(cheb_polys, 1, 2), 1, n_pad), 2, n_pad)        # T_k^T, f32
    theta_big = _build_theta_blocks(theta, T).astype(jnp.bfloat16)

    n_tiles = n_pad // row_tile
    kernel = functools.partial(_cheb_kernel, K=K)

    def run(single_buffer_theta):
        theta_kwargs = dict(pipeline_mode=pl.Buffered(1)) if single_buffer_theta else {}
        # Explicit scoped-VMEM budget sized from the block shapes (+ headroom).
        blk_bytes = (
            2 * (row_tile * n_pad * 4)                                  # S^T tile (f32, x2 buf)
            + 2 * (n_pad * F_in * T * 2)                                # x slab (bf16)
            + 2 * (K * row_tile * n_pad * 4)                            # cheb^T tiles (f32)
            + (1 if single_buffer_theta else 2) * (K * F_in * T * F_out * T * 2)  # Theta (bf16)
            + 2 * (row_tile * F_out * T * 4))                           # output tile (f32)
        vmem_limit = int(min(max(blk_bytes + (8 << 20), 32 << 20), 128 << 20))
        return pl.pallas_call(
            kernel,
            out_shape=jax.ShapeDtypeStruct((B, n_pad, F_out * T), jnp.float32),
            grid=(B, n_tiles),
            in_specs=[
                pl.BlockSpec((1, row_tile, n_pad), lambda b, n: (b, n, 0)),        # S^T rows
                pl.BlockSpec((1, n_pad, F_in * T), lambda b, n: (b, 0, 0)),        # x (per batch)
                pl.BlockSpec((K, row_tile, n_pad), lambda b, n: (0, n, 0)),        # cheb^T rows
                pl.BlockSpec((K, F_in * T, F_out * T), lambda b, n: (0, 0, 0),     # Theta (const)
                             **theta_kwargs),
            ],
            out_specs=pl.BlockSpec((1, row_tile, F_out * T), lambda b, n: (b, n, 0)),
            compiler_params=pltpu.CompilerParams(
                dimension_semantics=("parallel", "parallel"),
                vmem_limit_bytes=vmem_limit),
        )(sat_t, x2, cheb_t, theta_big)

    try:
        out_flat = run(True)
    except Exception:
        # pl.Buffered(1) on the grid-constant Theta operand is a pure VMEM optimization;
        # fall back to default double buffering if this JAX build rejects pipeline_mode
        # on a top-level pallas_call BlockSpec.
        out_flat = run(False)

    # Slice off the zero-padded rows; free reshape back to the PyTorch layout (lanes were (o, t)).
    return out_flat[:, :N].reshape(B, N, F_out, T)


def _reference(x, spatial_attention, cheb_polys, theta):
    # Plain-JAX reference mirroring the PyTorch loop.
    B, N, F_in, T = x.shape
    K, _, F_out = theta.shape
    outs = []
    for t in range(T):
        gs = x[:, :, :, t]                                    # (B, N, F_in)
        out = jnp.zeros((B, N, F_out), jnp.float32)
        for k in range(K):
            t_k_at = cheb_polys[k][None] * spatial_attention  # (B, N, N)
            rhs = jnp.einsum('bji,bjf->bif', t_k_at, gs)
            out = out + jnp.einsum('bif,fo->bio', rhs, theta[k])
        outs.append(out[..., None])
    return jax.nn.relu(jnp.concatenate(outs, axis=-1))


if __name__ == "__main__":
    B, N, F_in, F_out, T, K = 2, 16, 4, 8, 8, 3

    key = jax.random.PRNGKey(0)
    k1, k2, k3, k4 = jax.random.split(key, 4)

    x = jax.random.normal(k1, (B, N, F_in, T), dtype=jnp.float32)
    spatial_attention = jax.nn.softmax(
        jax.random.normal(k2, (B, N, N), dtype=jnp.float32), axis=-1)
    cheb_polys = jax.random.normal(k3, (K, N, N), dtype=jnp.float32) * 0.5
    theta = jax.random.normal(k4, (K, F_in, F_out), dtype=jnp.float32) * 0.1

    out = cheb_conv_with_sat(x, spatial_attention, cheb_polys, theta)
    out = jax.block_until_ready(out)

    ref = _reference(x, spatial_attention, cheb_polys, theta)
    assert out.shape == (B, N, F_out, T)
    max_err = float(jnp.max(jnp.abs(out - ref)))
    # bf16 MXU operands with f32 accumulation -> loosened tolerance vs the pure-f32 version.
    assert jnp.allclose(out, ref, atol=1e-2, rtol=1e-2), max_err

    print("KERNEL_OK")
</pallas_src>

<mosaic_0001>
module attributes {stable_mosaic.version = 11 : i64} {
  func.func @_cheb_kernel(%arg0: i32, %arg1: i32, %arg2: memref<1x128x128xf32, #tpu.memory_space<vmem>>, %arg3: memref<1x128x32xbf16, #tpu.memory_space<vmem>>, %arg4: memref<3x128x128xf32, #tpu.memory_space<vmem>>, %arg5: memref<3x32x64xbf16, #tpu.memory_space<vmem>>, %arg6: memref<1x128x64xf32, #tpu.memory_space<vmem>>) attributes {dimension_semantics = [#tpu.dimension_semantics<parallel>, #tpu.dimension_semantics<parallel>], iteration_bounds = array<i64: 2, 1>, scalar_prefetch = 0 : i64, scratch_operands = 0 : i64, tpu.core_type = #tpu.core_type<tc>, window_params = [{transform_indices = @transform_0, window_bounds = array<i64: 1, 128, 128>}, {transform_indices = @transform_1, window_bounds = array<i64: 1, 128, 32>}, {transform_indices = @transform_2, window_bounds = array<i64: 3, 128, 128>}, {pipeline_mode = #tpu.pipeline_mode<synchronous>, transform_indices = @transform_3, window_bounds = array<i64: 3, 32, 64>}, {transform_indices = @transform_4, window_bounds = array<i64: 1, 128, 64>}]} {
    %c0 = arith.constant 0 : index
    %c0_0 = arith.constant 0 : index
    %c0_1 = arith.constant 0 : index
    %0 = vector.load %arg2[%c0, %c0_0, %c0_1] : memref<1x128x128xf32, #tpu.memory_space<vmem>>, vector<1x128x128xf32>
    %1 = vector.shape_cast %0 : vector<1x128x128xf32> to vector<128x128xf32>
    %c0_2 = arith.constant 0 : index
    %c0_3 = arith.constant 0 : index
    %c0_4 = arith.constant 0 : index
    %2 = vector.load %arg3[%c0_2, %c0_3, %c0_4] : memref<1x128x32xbf16, #tpu.memory_space<vmem>>, vector<1x128x32xbf16>
    %3 = vector.shape_cast %2 : vector<1x128x32xbf16> to vector<128x32xbf16>
    %cst = arith.constant 0.000000e+00 : f32
    %4 = vector.broadcast %cst : f32 to vector<128x64xf32>
    %c0_5 = arith.constant 0 : index
    %c0_6 = arith.constant 0 : index
    %c0_7 = arith.constant 0 : index
    %5 = vector.load %arg4[%c0_5, %c0_6, %c0_7] : memref<3x128x128xf32, #tpu.memory_space<vmem>>, vector<1x128x128xf32>
    %6 = vector.shape_cast %5 : vector<1x128x128xf32> to vector<128x128xf32>
    %7 = arith.mulf %6, %1 : vector<128x128xf32>
    %8 = arith.truncf %7 : vector<128x128xf32> to vector<128x128xbf16>
    %cst_8 = arith.constant dense<0.000000e+00> : vector<128x32xf32>
    %9 = tpu.matmul %8, %3, %cst_8 {dimension_numbers = #tpu.dot_dimension_numbers<[1], [0], [0], [1], [0, 0, 1, 1], [], []>} : vector<128x128xbf16>, vector<128x32xbf16>, vector<128x32xf32> -> vector<128x32xf32>
    %10 = arith.truncf %9 : vector<128x32xf32> to vector<128x32xbf16>
    %c0_9 = arith.constant 0 : index
    %c0_10 = arith.constant 0 : index
    %c0_11 = arith.constant 0 : index
    %11 = vector.load %arg5[%c0_9, %c0_10, %c0_11] : memref<3x32x64xbf16, #tpu.memory_space<vmem>>, vector<1x32x64xbf16>
    %12 = vector.shape_cast %11 : vector<1x32x64xbf16> to vector<32x64xbf16>
    %cst_12 = arith.constant dense<0.000000e+00> : vector<128x64xf32>
    %13 = tpu.matmul %10, %12, %cst_12 {dimension_numbers = #tpu.dot_dimension_numbers<[1], [0], [0], [1], [0, 0, 1, 1], [], []>} : vector<128x32xbf16>, vector<32x64xbf16>, vector<128x64xf32> -> vector<128x64xf32>
    %14 = arith.addf %4, %13 : vector<128x64xf32>
    %c1 = arith.constant 1 : index
    %c0_13 = arith.constant 0 : index
    %c0_14 = arith.constant 0 : index
    %15 = vector.load %arg4[%c1, %c0_13, %c0_14] : memref<3x128x128xf32, #tpu.memory_space<vmem>>, vector<1x128x128xf32>
    %16 = vector.shape_cast %15 : vector<1x128x128xf32> to vector<128x128xf32>
    %17 = arith.mulf %16, %1 : vector<128x128xf32>
    %18 = arith.truncf %17 : vector<128x128xf32> to vector<128x128xbf16>
    %cst_15 = arith.constant dense<0.000000e+00> : vector<128x32xf32>
    %19 = tpu.matmul %18, %3, %cst_15 {dimension_numbers = #tpu.dot_dimension_numbers<[1], [0], [0], [1], [0, 0, 1, 1], [], []>} : vector<128x128xbf16>, vector<128x32xbf16>, vector<128x32xf32> -> vector<128x32xf32>
    %20 = arith.truncf %19 : vector<128x32xf32> to vector<128x32xbf16>
    %c1_16 = arith.constant 1 : index
    %c0_17 = arith.constant 0 : index
    %c0_18 = arith.constant 0 : index
    %21 = vector.load %arg5[%c1_16, %c0_17, %c0_18] : memref<3x32x64xbf16, #tpu.memory_space<vmem>>, vector<1x32x64xbf16>
    %22 = vector.shape_cast %21 : vector<1x32x64xbf16> to vector<32x64xbf16>
    %cst_19 = arith.constant dense<0.000000e+00> : vector<128x64xf32>
    %23 = tpu.matmul %20, %22, %cst_19 {dimension_numbers = #tpu.dot_dimension_numbers<[1], [0], [0], [1], [0, 0, 1, 1], [], []>} : vector<128x32xbf16>, vector<32x64xbf16>, vector<128x64xf32> -> vector<128x64xf32>
    %24 = arith.addf %14, %23 : vector<128x64xf32>
    %c2 = arith.constant 2 : index
    %c0_20 = arith.constant 0 : index
    %c0_21 = arith.constant 0 : index
    %25 = vector.load %arg4[%c2, %c0_20, %c0_21] : memref<3x128x128xf32, #tpu.memory_space<vmem>>, vector<1x128x128xf32>
    %26 = vector.shape_cast %25 : vector<1x128x128xf32> to vector<128x128xf32>
    %27 = arith.mulf %26, %1 : vector<128x128xf32>
    %28 = arith.truncf %27 : vector<128x128xf32> to vector<128x128xbf16>
    %cst_22 = arith.constant dense<0.000000e+00> : vector<128x32xf32>
    %29 = tpu.matmul %28, %3, %cst_22 {dimension_numbers = #tpu.dot_dimension_numbers<[1], [0], [0], [1], [0, 0, 1, 1], [], []>} : vector<128x128xbf16>, vector<128x32xbf16>, vector<128x32xf32> -> vector<128x32xf32>
    %30 = arith.truncf %29 : vector<128x32xf32> to vector<128x32xbf16>
    %c2_23 = arith.constant 2 : index
    %c0_24 = arith.constant 0 : index
    %c0_25 = arith.constant 0 : index
    %31 = vector.load %arg5[%c2_23, %c0_24, %c0_25] : memref<3x32x64xbf16, #tpu.memory_space<vmem>>, vector<1x32x64xbf16>
    %32 = vector.shape_cast %31 : vector<1x32x64xbf16> to vector<32x64xbf16>
    %cst_26 = arith.constant dense<0.000000e+00> : vector<128x64xf32>
    %33 = tpu.matmul %30, %32, %cst_26 {dimension_numbers = #tpu.dot_dimension_numbers<[1], [0], [0], [1], [0, 0, 1, 1], [], []>} : vector<128x32xbf16>, vector<32x64xbf16>, vector<128x64xf32> -> vector<128x64xf32>
    %34 = arith.addf %24, %33 : vector<128x64xf32>
    %cst_27 = arith.constant 0.000000e+00 : f32
    %35 = vector.broadcast %cst_27 : f32 to vector<128x64xf32>
    %36 = arith.maximumf %34, %35 : vector<128x64xf32>
    %c0_28 = arith.constant 0 : index
    %c0_29 = arith.constant 0 : index
    %c0_30 = arith.constant 0 : index
    %37 = vector.load %arg6[%c0_28, %c0_29, %c0_30] : memref<1x128x64xf32, #tpu.memory_space<vmem>>, vector<1x128x64xf32>
    %38 = vector.shape_cast %37 : vector<1x128x64xf32> to vector<128x64xf32>
    %39 = vector.shape_cast %36 : vector<128x64xf32> to vector<1x128x64xf32>
    tpu.vector_store %arg6[%c0_28, %c0_29, %c0_30], %39 {strides = array<i32>} : memref<1x128x64xf32, #tpu.memory_space<vmem>>, vector<1x128x64xf32>,
    return
  }
  func.func @transform_0(%arg0: i32, %arg1: i32) -> (i32, i32, i32) {
    %c0_i32 = arith.constant 0 : i32
    %c0_i32_0 = arith.constant 0 : i32
    return %arg0, %arg1, %c0_i32 : i32, i32, i32
  }
  func.func @transform_1(%arg0: i32, %arg1: i32) -> (i32, i32, i32) {
    %c0_i32 = arith.constant 0 : i32
    %c0_i32_0 = arith.constant 0 : i32
    %c0_i32_1 = arith.constant 0 : i32
    return %arg0, %c0_i32, %c0_i32_0 : i32, i32, i32
  }
  func.func @transform_2(%arg0: i32, %arg1: i32) -> (i32, i32, i32) {
    %c0_i32 = arith.constant 0 : i32
    %c0_i32_0 = arith.constant 0 : i32
    %c0_i32_1 = arith.constant 0 : i32
    return %c0_i32, %arg1, %c0_i32_0 : i32, i32, i32
  }
  func.func @transform_3(%arg0: i32, %arg1: i32) -> (i32, i32, i32) {
    %c0_i32 = arith.constant 0 : i32
    %c0_i32_0 = arith.constant 0 : i32
    %c0_i32_1 = arith.constant 0 : i32
    %c0_i32_2 = arith.constant 0 : i32
    return %c0_i32, %c0_i32_0, %c0_i32_1 : i32, i32, i32
  }
  func.func @transform_4(%arg0: i32, %arg1: i32) -> (i32, i32, i32) {
    %c0_i32 = arith.constant 0 : i32
    %c0_i32_0 = arith.constant 0 : i32
    return %arg0, %arg1, %c0_i32 : i32, i32, i32
  }
}

module attributes {stable_mosaic.version = 11 : i64} {
  func.func @_cheb_kernel(%arg0: i32, %arg1: i32, %arg2: memref<1x128x128xf32, #tpu.memory_space<vmem>>, %arg3: memref<1x128x32xbf16, #tpu.memory_space<vmem>>, %arg4: memref<3x128x128xf32, #tpu.memory_space<vmem>>, %arg5: memref<3x32x64xbf16, #tpu.memory_space<vmem>>, %arg6: memref<1x128x64xf32, #tpu.memory_space<vmem>>) attributes {dimension_semantics = [#tpu.dimension_semantics<parallel>, #tpu.dimension_semantics<parallel>], iteration_bounds = array<i64: 2, 1>, scalar_prefetch = 0 : i64, scratch_operands = 0 : i64, tpu.core_type = #tpu.core_type<tc>, window_params = [{transform_indices = @transform_0, window_bounds = array<i64: 1, 128, 128>}, {transform_indices = @transform_1, window_bounds = array<i64: 1, 128, 32>}, {transform_indices = @transform_2, window_bounds = array<i64: 3, 128, 128>}, {pipeline_mode = #tpu.pipeline_mode<synchronous>, transform_indices = @transform_3, window_bounds = array<i64: 3, 32, 64>}, {transform_indices = @transform_4, window_bounds = array<i64: 1, 128, 64>}]} {
    %c0 = arith.constant 0 : index
    %c0_0 = arith.constant 0 : index
    %c0_1 = arith.constant 0 : index
    %0 = vector.load %arg2[%c0, %c0_0, %c0_1] : memref<1x128x128xf32, #tpu.memory_space<vmem>>, vector<1x128x128xf32>
    %1 = vector.shape_cast %0 : vector<1x128x128xf32> to vector<128x128xf32>
    %c0_2 = arith.constant 0 : index
    %c0_3 = arith.constant 0 : index
    %c0_4 = arith.constant 0 : index
    %2 = vector.load %arg3[%c0_2, %c0_3, %c0_4] : memref<1x128x32xbf16, #tpu.memory_space<vmem>>, vector<1x128x32xbf16>
    %3 = vector.shape_cast %2 : vector<1x128x32xbf16> to vector<128x32xbf16>
    %cst = arith.constant 0.000000e+00 : f32
    %4 = vector.broadcast %cst : f32 to vector<128x64xf32>
    %c0_5 = arith.constant 0 : index
    %c0_6 = arith.constant 0 : index
    %c0_7 = arith.constant 0 : index
    %5 = vector.load %arg4[%c0_5, %c0_6, %c0_7] : memref<3x128x128xf32, #tpu.memory_space<vmem>>, vector<1x128x128xf32>
    %6 = vector.shape_cast %5 : vector<1x128x128xf32> to vector<128x128xf32>
    %7 = arith.mulf %6, %1 : vector<128x128xf32>
    %8 = arith.truncf %7 : vector<128x128xf32> to vector<128x128xbf16>
    %cst_8 = arith.constant dense<0.000000e+00> : vector<128x32xf32>
    %9 = tpu.matmul %8, %3, %cst_8 {dimension_numbers = #tpu.dot_dimension_numbers<[1], [0], [0], [1], [0, 0, 1, 1], [], []>} : vector<128x128xbf16>, vector<128x32xbf16>, vector<128x32xf32> -> vector<128x32xf32>
    %10 = arith.truncf %9 : vector<128x32xf32> to vector<128x32xbf16>
    %c0_9 = arith.constant 0 : index
    %c0_10 = arith.constant 0 : index
    %c0_11 = arith.constant 0 : index
    %11 = vector.load %arg5[%c0_9, %c0_10, %c0_11] : memref<3x32x64xbf16, #tpu.memory_space<vmem>>, vector<1x32x64xbf16>
    %12 = vector.shape_cast %11 : vector<1x32x64xbf16> to vector<32x64xbf16>
    %cst_12 = arith.constant dense<0.000000e+00> : vector<128x64xf32>
    %13 = tpu.matmul %10, %12, %cst_12 {dimension_numbers = #tpu.dot_dimension_numbers<[1], [0], [0], [1], [0, 0, 1, 1], [], []>} : vector<128x32xbf16>, vector<32x64xbf16>, vector<128x64xf32> -> vector<128x64xf32>
    %14 = arith.addf %4, %13 : vector<128x64xf32>
    %c1 = arith.constant 1 : index
    %c0_13 = arith.constant 0 : index
    %c0_14 = arith.constant 0 : index
    %15 = vector.load %arg4[%c1, %c0_13, %c0_14] : memref<3x128x128xf32, #tpu.memory_space<vmem>>, vector<1x128x128xf32>
    %16 = vector.shape_cast %15 : vector<1x128x128xf32> to vector<128x128xf32>
    %17 = arith.mulf %16, %1 : vector<128x128xf32>
    %18 = arith.truncf %17 : vector<128x128xf32> to vector<128x128xbf16>
    %cst_15 = arith.constant dense<0.000000e+00> : vector<128x32xf32>
    %19 = tpu.matmul %18, %3, %cst_15 {dimension_numbers = #tpu.dot_dimension_numbers<[1], [0], [0], [1], [0, 0, 1, 1], [], []>} : vector<128x128xbf16>, vector<128x32xbf16>, vector<128x32xf32> -> vector<128x32xf32>
    %20 = arith.truncf %19 : vector<128x32xf32> to vector<128x32xbf16>
    %c1_16 = arith.constant 1 : index
    %c0_17 = arith.constant 0 : index
    %c0_18 = arith.constant 0 : index
    %21 = vector.load %arg5[%c1_16, %c0_17, %c0_18] : memref<3x32x64xbf16, #tpu.memory_space<vmem>>, vector<1x32x64xbf16>
    %22 = vector.shape_cast %21 : vector<1x32x64xbf16> to vector<32x64xbf16>
    %cst_19 = arith.constant dense<0.000000e+00> : vector<128x64xf32>
    %23 = tpu.matmul %20, %22, %cst_19 {dimension_numbers = #tpu.dot_dimension_numbers<[1], [0], [0], [1], [0, 0, 1, 1], [], []>} : vector<128x32xbf16>, vector<32x64xbf16>, vector<128x64xf32> -> vector<128x64xf32>
    %24 = arith.addf %14, %23 : vector<128x64xf32>
    %c2 = arith.constant 2 : index
    %c0_20 = arith.constant 0 : index
    %c0_21 = arith.constant 0 : index
    %25 = vector.load %arg4[%c2, %c0_20, %c0_21] : memref<3x128x128xf32, #tpu.memory_space<vmem>>, vector<1x128x128xf32>
    %26 = vector.shape_cast %25 : vector<1x128x128xf32> to vector<128x128xf32>
    %27 = arith.mulf %26, %1 : vector<128x128xf32>
    %28 = arith.truncf %27 : vector<128x128xf32> to vector<128x128xbf16>
    %cst_22 = arith.constant dense<0.000000e+00> : vector<128x32xf32>
    %29 = tpu.matmul %28, %3, %cst_22 {dimension_numbers = #tpu.dot_dimension_numbers<[1], [0], [0], [1], [0, 0, 1, 1], [], []>} : vector<128x128xbf16>, vector<128x32xbf16>, vector<128x32xf32> -> vector<128x32xf32>
    %30 = arith.truncf %29 : vector<128x32xf32> to vector<128x32xbf16>
    %c2_23 = arith.constant 2 : index
    %c0_24 = arith.constant 0 : index
    %c0_25 = arith.constant 0 : index
    %31 = vector.load %arg5[%c2_23, %c0_24, %c0_25] : memref<3x32x64xbf16, #tpu.memory_space<vmem>>, vector<1x32x64xbf16>
    %32 = vector.shape_cast %31 : vector<1x32x64xbf16> to vector<32x64xbf16>
    %cst_26 = arith.constant dense<0.000000e+00> : vector<128x64xf32>
    %33 = tpu.matmul %30, %32, %cst_26 {dimension_numbers = #tpu.dot_dimension_numbers<[1], [0], [0], [1], [0, 0, 1, 1], [], []>} : vector<128x32xbf16>, vector<32x64xbf16>, vector<128x64xf32> -> vector<128x64xf32>
    %34 = arith.addf %24, %33 : vector<128x64xf32>
    %cst_27 = arith.constant 0.000000e+00 : f32
    %35 = vector.broadcast %cst_27 : f32 to vector<128x64xf32>
    %36 = arith.maximumf %34, %35 : vector<128x64xf32>
    %c0_28 = arith.constant 0 : index
    %c0_29 = arith.constant 0 : index
    %c0_30 = arith.constant 0 : index
    %37 = vector.load %arg6[%c0_28, %c0_29, %c0_30] : memref<1x128x64xf32, #tpu.memory_space<vmem>>, vector<1x128x64xf32>
    %38 = vector.shape_cast %37 : vector<1x128x64xf32> to vector<128x64xf32>
    %39 = vector.shape_cast %36 : vector<128x64xf32> to vector<1x128x64xf32>
    tpu.vector_store %arg6[%c0_28, %c0_29, %c0_30], %39 {strides = array<i32>} : memref<1x128x64xf32, #tpu.memory_space<vmem>>, vector<1x128x64xf32>,
    return
  }
  func.func @transform_0(%arg0: i32, %arg1: i32) -> (i32, i32, i32) {
    %c0_i32 = arith.constant 0 : i32
    %c0_i32_0 = arith.constant 0 : i32
    return %arg0, %arg1, %c0_i32 : i32, i32, i32
  }
  func.func @transform_1(%arg0: i32, %arg1: i32) -> (i32, i32, i32) {
    %c0_i32 = arith.constant 0 : i32
    %c0_i32_0 = arith.constant 0 : i32
    %c0_i32_1 = arith.constant 0 : i32
    return %arg0, %c0_i32, %c0_i32_0 : i32, i32, i32
  }
  func.func @transform_2(%arg0: i32, %arg1: i32) -> (i32, i32, i32) {
    %c0_i32 = arith.constant 0 : i32
    %c0_i32_0 = arith.constant 0 : i32
    %c0_i32_1 = arith.constant 0 : i32
    return %c0_i32, %arg1, %c0_i32_0 : i32, i32, i32
  }
  func.func @transform_3(%arg0: i32, %arg1: i32) -> (i32, i32, i32) {
    %c0_i32 = arith.constant 0 : i32
    %c0_i32_0 = arith.constant 0 : i32
    %c0_i32_1 = arith.constant 0 : i32
    %c0_i32_2 = arith.constant 0 : i32
    return %c0_i32, %c0_i32_0, %c0_i32_1 : i32, i32, i32
  }
  func.func @transform_4(%arg0: i32, %arg1: i32) -> (i32, i32, i32) {
    %c0_i32 = arith.constant 0 : i32
    %c0_i32_0 = arith.constant 0 : i32
    return %arg0, %arg1, %c0_i32 : i32, i32, i32
  }
}

</mosaic_0001>

<llo_original>
// kernel: tpu_custom_call.1
$region0: #{tpu_custom_call.1}
  #allocation0 [shape = 'u32[]', space=smem, size = 0x4, offset = 0x4, fixed_abs, tag = 'smem constant byte address 0x4 - core index']
  #allocation1 [shape = 'u32[144,128]{1,0:T(1,128)}', space=vmem, size = 0x12000, scoped, tag = 'internal scratch']
  %s0 = inlined_call_operand.hbm [shape: f32[2,128,128], index: 0, kind: input, shape index: {}]
  %s1 = inlined_call_operand.vmem [shape: bf16[2,128,32], index: 1, kind: input, shape index: {}]
  %s2 = inlined_call_operand.hbm [shape: f32[3,128,128], index: 2, kind: input, shape index: {}]
  %s3 = inlined_call_operand.vmem [shape: bf16[3,32,64], index: 3, kind: input, shape index: {}]
  %s4 = inlined_call_operand.vmem [shape: f32[2,128,64], index: 4, kind: output, shape index: {}]
  %s5 = sld [smem:[#allocation0]]
  $region57: #{tpu_custom_call.1} parent=0
    _
  %s7 = ssub.s32 1, %s5
  %s8 = scalar_select 0, %s7, %s5
  $region1: #{tpu_custom_call.1} parent=0
    #allocation2 [shape = 'u8[131072]{0}', space=vmem, size = 0x20000, scoped, tag = 'input window, operand 0']
    #allocation3 [shape = 's32[2]{0}', space=sflag, size = 0x8, scoped, tag = 'scoped memory for tpu_custom_call.1']
    #allocation4 [shape = 'u8[196608]{0}', space=vmem, size = 0x30000, scoped, tag = 'input window, operand 2, single buffered']
    #allocation5 [shape = 's32[1]{0}', space=sflag, size = 0x4, scoped, tag = 'scoped memory for tpu_custom_call.1']
    %9 = vsyncpa [#allocation3], 0
    %s10 = scalar_lea.sflag [#allocation3], 1
    %11 = vsyncpa %s10, 0
    %12 = vsyncpa [#allocation5], 0
    loop: start=0, step=1, limit=4
    $region2: #{tpu_custom_call.1} parent=1 // loop_pre_header
      _
    $region3: #{tpu_custom_call.1} parent=1 // loop_header
      %s14 = sphi 0, %s18
      %p15 = scmp.ge.s32.totalorder %s14, 4
      %s21 = sphi 0, %s33
      %s22 = sphi 0, %s29
      %s23 = sphi 0, %s21
      %s24 = sphi 0, %s22
      %s25 = sphi 0, %s23
      %s26 = sphi 0, %s24
      %s38 = sphi 0, %s40
      %s41 = sphi 0, %s38
      %s42 = sphi 0, %s41
      %s58 = sphi 0, %s42
      %s64 = sphi 0, %s66
      %s67 = sphi 0, %s64
      %s68 = sphi 0, %s67
      %s84 = sphi 0, %s68
      %s90 = sphi 0, %s92
      %s93 = sphi 0, %s90
      %s94 = sphi 0, %s93
      %s110 = sphi 0, %s94
      %s114 = sphi 0, %s114
      %s116 = sphi 0, %s114
      %s117 = sphi 0, %s116
      %s131 = sphi 0, %s117
      %s139 = sphi 0, %s141
      %s142 = sphi 0, %s139
      %s143 = sphi 0, %s142
      %s159 = sphi 0, %s143
    $region4: #{tpu_custom_call.1} parent=1 // loop_header_branch
      %17 = sbr.rel (%p15) target = $region8
    $region5: #{tpu_custom_call.1} parent=1 // loop_body
      %s19 = ssub.s32 %s14, 1
      %s20 = ssub.s32 %s14, 2
      %s27 = sadd.s32 1, %s22
      %p28 = scmp.ge.s32.totalorder %s27, 1
      %s29 = scalar_select %p28, 0, %s27
      %s30 = sadd.s32 1, %s21
      %s31 = scalar_select %p28, %s30, %s21
      %p32 = scmp.ge.s32.totalorder %s31, 2
      %s33 = scalar_select %p32, 0, %s31
      %s34 = ssub.s32 %s21, %s33
      %s35 = ssub.s32 %s22, %s29
      %s36 = sor.u32 %s34, %s35
      %p37 = scmp.eq.s32.totalorder %s36, 0
      %s39 = sadd.s32 %s38, 1
      %s40 = scalar_select %p37, %s38, %s39
      %p43 = pneg %p37
      %p44 = scmp.eq.s32.totalorder %s14, 1
      %p45 = por %p43, %p44
      %p46 = scmp.ne.s32.totalorder %s38, %s41
      %p47 = scmp.eq.s32.totalorder %s14, 0
      %p48 = por %p46, %p47
      %p49 = scmp.ne.s32.totalorder %s38, %s41
      %p50 = scmp.eq.s32.totalorder %s19, 1
      %p51 = por %p49, %p50
      %p52 = scmp.ne.s32.totalorder %s41, %s42
      %p53 = scmp.eq.s32.totalorder %s19, 0
      %p54 = por %p52, %p53
      %p55 = scmp.ne.s32.totalorder %s41, %s42
      %p56 = scmp.eq.s32.totalorder %s20, 1
      %p57 = por %p55, %p56
      %p59 = scmp.ne.s32.totalorder %s42, %s58
      %p60 = scmp.eq.s32.totalorder %s20, 0
      %p61 = por %p59, %p60
      %s62 = ssub.s32 %s21, %s33
      %p63 = scmp.eq.s32.totalorder %s62, 0
      %s65 = sadd.s32 %s64, 1
      %s66 = scalar_select %p63, %s64, %s65
      %p69 = pneg %p63
      %p70 = scmp.eq.s32.totalorder %s14, 1
      %p71 = por %p69, %p70
      %p72 = scmp.ne.s32.totalorder %s64, %s67
      %p73 = scmp.eq.s32.totalorder %s14, 0
      %p74 = por %p72, %p73
      %p75 = scmp.ne.s32.totalorder %s64, %s67
      %p76 = scmp.eq.s32.totalorder %s19, 1
      %p77 = por %p75, %p76
      %p78 = scmp.ne.s32.totalorder %s67, %s68
      %p79 = scmp.eq.s32.totalorder %s19, 0
      %p80 = por %p78, %p79
      %p81 = scmp.ne.s32.totalorder %s67, %s68
      %p82 = scmp.eq.s32.totalorder %s20, 1
      %p83 = por %p81, %p82
      %p85 = scmp.ne.s32.totalorder %s68, %s84
      %p86 = scmp.eq.s32.totalorder %s20, 0
      %p87 = por %p85, %p86
      %s88 = ssub.s32 %s22, %s29
      %p89 = scmp.eq.s32.totalorder %s88, 0
      %s91 = sadd.s32 %s90, 1
      %s92 = scalar_select %p89, %s90, %s91
      %p95 = pneg %p89
      %p96 = scmp.eq.s32.totalorder %s14, 1
      %p97 = por %p95, %p96
      %p98 = scmp.ne.s32.totalorder %s90, %s93
      %p99 = scmp.eq.s32.totalorder %s14, 0
      %p100 = por %p98, %p99
      %p101 = scmp.ne.s32.totalorder %s90, %s93
      %p102 = scmp.eq.s32.totalorder %s19, 1
      %p103 = por %p101, %p102
      %p104 = scmp.ne.s32.totalorder %s93, %s94
      %p105 = scmp.eq.s32.totalorder %s19, 0
      %p106 = por %p104, %p105
      %p107 = scmp.ne.s32.totalorder %s93, %s94
      %p108 = scmp.eq.s32.totalorder %s20, 1
      %p109 = por %p107, %p108
      %p111 = scmp.ne.s32.totalorder %s94, %s110
      %p112 = scmp.eq.s32.totalorder %s20, 0
      %p113 = por %p111, %p112
      %s115 = sadd.s32 %s114, 1
      %p118 = scmp.eq.s32.totalorder %s14, 1
      %p119 = scmp.ne.s32.totalorder %s114, %s116
      %p120 = scmp.eq.s32.totalorder %s14, 0
      %p121 = por %p119, %p120
      %p122 = scmp.ne.s32.totalorder %s114, %s116
      %p123 = scmp.eq.s32.totalorder %s19, 1
      %p124 = por %p122, %p123
      %p125 = scmp.ne.s32.totalorder %s116, %s117
      %p126 = scmp.eq.s32.totalorder %s19, 0
      %p127 = por %p125, %p126
      %p128 = scmp.ne.s32.totalorder %s116, %s117
      %p129 = scmp.eq.s32.totalorder %s20, 1
      %p130 = por %p128, %p129
      %p132 = scmp.ne.s32.totalorder %s117, %s131
      %p133 = scmp.eq.s32.totalorder %s20, 0
      %p134 = por %p132, %p133
      %s135 = ssub.s32 %s21, %s33
      %s136 = ssub.s32 %s22, %s29
      %s137 = sor.u32 %s135, %s136
      %p138 = scmp.eq.s32.totalorder %s137, 0
      %s140 = sadd.s32 %s139, 1
      %s141 = scalar_select %p138, %s139, %s140
      %p144 = pneg %p138
      %p145 = scmp.eq.s32.totalorder %s14, 1
      %p146 = por %p144, %p145
      %p147 = scmp.ne.s32.totalorder %s139, %s142
      %p148 = scmp.eq.s32.totalorder %s14, 0
      %p149 = por %p147, %p148
      %p150 = scmp.ne.s32.totalorder %s139, %s142
      %p151 = scmp.eq.s32.totalorder %s19, 1
      %p152 = por %p150, %p151
      %p153 = scmp.ne.s32.totalorder %s142, %s143
      %p154 = scmp.eq.s32.totalorder %s19, 0
      %p155 = por %p153, %p154
      %p156 = scmp.ne.s32.totalorder %s142, %s143
      %p157 = scmp.eq.s32.totalorder %s20, 1
      %p158 = por %p156, %p157
      %p160 = scmp.ne.s32.totalorder %s143, %s159
      %p161 = scmp.eq.s32.totalorder %s20, 0
      %p162 = por %p160, %p161
      %p163 = scmp.le.s32.totalorder 1, %s14
      %p164 = scmp.lt.s32.totalorder %s14, 3
      %p165 = pnand %p163, %p164
      %p166 = pneg %p165
      // Predicated region
      $region9: #{tpu_custom_call.1} parent=5 // pred_check
        _
      $region10: #{tpu_custom_call.1} parent=5 // pred_check_branch
        %168 = sbr.rel (%p165) target = $region12
      $region11: #{tpu_custom_call.1} parent=5 // pred_region
        %s169 = ssub.s32 %s14, 1
        // Predicated region
        $region13: #{tpu_custom_call.1} parent=11 // pred_check
          %p170 = pneg %p106
        $region14: #{tpu_custom_call.1} parent=11 // pred_check_branch
          %172 = sbr.rel (%p170) target = $region16
        $region15: #{tpu_custom_call.1} parent=11 // pred_region
          %s173 = smul.u32 16, %s24
          %s175 = ssub.s32 6144, 6144
          %176 = vsyncadd [#allocation5], %s175
          %s177 = smul.addr %s173, 128
          %s178 = scalar_lea.hbm %s2, %s177
          %s179 = sshll.u32 [#allocation4], 4
          %s180 = int_to_ptr.vmem [resolvable:$true] %s179
          %185 = dma.hbm_to_vmem [thread:$0]  %s178, 6144, %s180, [#allocation5], 128, 128, 8
        $region16: #{tpu_custom_call.1} parent=11 // pred_fallthru
          _
        // Predicated region
        $region17: #{tpu_custom_call.1} parent=11 // pred_check
          %p186 = pneg %p127
        $region18: #{tpu_custom_call.1} parent=11 // pred_check_branch
          %188 = sbr.rel (%p186) target = $region20
        $region19: #{tpu_custom_call.1} parent=11 // pred_region
          _
        $region20: #{tpu_custom_call.1} parent=11 // pred_fallthru
          _
      $region12: #{tpu_custom_call.1} parent=5 // pred_fallthru
        _
      %p189 = scmp.lt.s32.totalorder %s14, 2
      // Predicated region
      $region21: #{tpu_custom_call.1} parent=5 // pred_check
        %p190 = pneg %p189
      $region22: #{tpu_custom_call.1} parent=5 // pred_check_branch
        %192 = sbr.rel (%p190) target = $region24
      $region23: #{tpu_custom_call.1} parent=5 // pred_region
        // Predicated region
        $region25: #{tpu_custom_call.1} parent=23 // pred_check
          %p193 = pneg %p48
        $region26: #{tpu_custom_call.1} parent=23 // pred_check_branch
          %195 = sbr.rel (%p193) target = $region28
        $region27: #{tpu_custom_call.1} parent=23 // pred_region
          %s196 = sand.u32 %s38, 1
          %s197 = scalar_lea.sflag [#allocation3], %s196
          %s198 = sand.u32 %s38, 1
          %s199 = smul.addr %s198, 128
          %s200 = scalar_lea.vmem [#allocation2], %s199
          %s201 = smul.u32 16, %s22
          %s203 = ssub.s32 2048, 2048
          %204 = vsyncadd %s197, %s203
          %s205 = smul.addr %s21, 16
          %s206 = sadd.s32 %s201, %s205
          %s207 = smul.addr %s206, 128
          %s208 = scalar_lea.hbm %s0, %s207
          %s209 = sshll.u32 %s200, 4
          %s210 = int_to_ptr.vmem [resolvable:$true] %s209
          %215 = dma.hbm_to_vmem [thread:$0]  %s208, 2048, %s210, %s197, 128, 128, 8
        $region28: #{tpu_custom_call.1} parent=23 // pred_fallthru
          _
        // Predicated region
        $region29: #{tpu_custom_call.1} parent=23 // pred_check
          %p216 = pneg %p74
        $region30: #{tpu_custom_call.1} parent=23 // pred_check_branch
          %218 = sbr.rel (%p216) target = $region32
        $region31: #{tpu_custom_call.1} parent=23 // pred_region
          %p219 = scmp.lt.s32.totalorder %s21, 1
          %s220 = scalar_select %p219, %s21, 1
          %s221 = smul.addr %s220, 16
          %s222 = smul.addr %s221, 4
          %s223 = scalar_lea.vmem %s1, %s222
        $region32: #{tpu_custom_call.1} parent=23 // pred_fallthru
          _
      $region24: #{tpu_custom_call.1} parent=5 // pred_fallthru
        _
      %p224 = scmp.le.s32.totalorder 1, %s14
      %p225 = scmp.lt.s32.totalorder %s14, 3
      %p226 = pnand %p224, %p225
      %p227 = pneg %p226
      // Predicated region
      $region33: #{tpu_custom_call.1} parent=5 // pred_check
        _
      $region34: #{tpu_custom_call.1} parent=5 // pred_check_branch
        %229 = sbr.rel (%p226) target = $region36
      $region35: #{tpu_custom_call.1} parent=5 // pred_region
        %s230 = ssub.s32 %s14, 1
        %s231 = sand.u32 %s41, 1
        %s232 = scalar_lea.sflag [#allocation3], %s231
        %s233 = sand.u32 %s41, 1
        %s234 = smul.addr %s233, 128
        %s235 = scalar_lea.vmem [#allocation2], %s234
        // Predicated region
        $region37: #{tpu_custom_call.1} parent=35 // pred_check
          %p236 = pneg %p54
        $region38: #{tpu_custom_call.1} parent=35 // pred_check_branch
          %238 = sbr.rel (%p236) target = $region40
        $region39: #{tpu_custom_call.1} parent=35 // pred_region
          %239 = dma.done %s232, 2048
        $region40: #{tpu_custom_call.1} parent=35 // pred_fallthru
          _
        // Predicated region
        $region41: #{tpu_custom_call.1} parent=35 // pred_check
          %p240 = pneg %p106
        $region42: #{tpu_custom_call.1} parent=35 // pred_check_branch
          %242 = sbr.rel (%p240) target = $region44
        $region43: #{tpu_custom_call.1} parent=35 // pred_region
          %243 = dma.done [#allocation5], 6144
        $region44: #{tpu_custom_call.1} parent=35 // pred_fallthru
          _
        %s244 = sand.u32 %s41, 1
        %s245 = scalar_lea.sflag [#allocation3], %s244
        %s246 = sand.u32 %s41, 1
        %s247 = smul.addr %s246, 128
        %s248 = scalar_lea.vmem [#allocation2], %s247
        %p249 = pneg %p54
        %p250 = pneg %p51
        %p251 = scmp.lt.s32.totalorder %s23, 1
        %s252 = scalar_select %p251, %s23, 1
        %s253 = smul.addr %s252, 16
        %s254 = smul.addr %s253, 4
        %s255 = scalar_lea.vmem %s1, %s254
        %p256 = pneg %p80
        %p257 = pneg %p77
        %p258 = pneg %p106
        %p259 = pneg %p103
        %p260 = pneg %p127
        %p261 = pneg %p124
        %p262 = pneg %p155
        %p263 = pneg %p152
        %s264 = smul.u32 16, %s24
        %p265 = scmp.lt.s32.totalorder %s23, 1
        %s266 = scalar_select %p265, %s23, 1
        %p267 = scmp.lt.s32.totalorder %s264, 15
        %s268 = scalar_select %p267, %s264, 15
        %s269 = smul.addr %s266, 16
        %s270 = sadd.s32 %s268, %s269
        %s271 = smul.addr %s270, 8
        %s272 = scalar_lea.vmem %s4, %s271
        %s273 = smul.u32 16, %s24
        %p274 = scmp.lt.s32.totalorder %s23, 1
        %s275 = scalar_select %p274, %s23, 1
        %s276 = smul.addr %s275, 16
        %s277 = smul.addr %s276, 4
        %s278 = scalar_lea.vmem %s1, %s277
        %s279 = smul.u32 16, %s24
        %s280 = smul.u32 16, %s24
        %p281 = scmp.lt.s32.totalorder %s23, 1
        %s282 = scalar_select %p281, %s23, 1
        %p283 = scmp.lt.s32.totalorder %s280, 15
        %s284 = scalar_select %p283, %s280, 15
        %s285 = smul.addr %s282, 16
        %s286 = sadd.s32 %s284, %s285
        %s287 = smul.addr %s286, 8
        %s288 = scalar_lea.vmem %s4, %s287
        %s289 = smul.u32 16, %s24
        %v291 = vld [vmem:[%s235] sm:$0xff]
        %v292 = vld [vmem:[%s235 + $0x8] sm:$0xff]
        %v293 = vld [vmem:[%s235 + $0x10] sm:$0xff]
        %v294 = vld [vmem:[%s235 + $0x18] sm:$0xff]
        %v295 = vld [vmem:[%s235 + $0x20] sm:$0xff]
        %v296 = vld [vmem:[%s235 + $0x28] sm:$0xff]
        %v297 = vld [vmem:[%s235 + $0x30] sm:$0xff]
        %v298 = vld [vmem:[%s235 + $0x38] sm:$0xff]
        %v299 = vld [vmem:[%s235 + $0x40] sm:$0xff]
        %v300 = vld [vmem:[%s235 + $0x48] sm:$0xff]
        %v301 = vld [vmem:[%s235 + $0x50] sm:$0xff]
        %v302 = vld [vmem:[%s235 + $0x58] sm:$0xff]
        %v303 = vld [vmem:[%s235 + $0x60] sm:$0xff]
        %v304 = vld [vmem:[%s235 + $0x68] sm:$0xff]
        %v305 = vld [vmem:[%s235 + $0x70] sm:$0xff]
        %v306 = vld [vmem:[%s235 + $0x78] sm:$0xff]
        %v307 = vld [vmem:[%s278] sm:$0xf]
        %v308 = vld [vmem:[%s278 + $0x4] sm:$0xf]
        %v309 = vld [vmem:[%s278 + $0x8] sm:$0xf]
        %v310 = vld [vmem:[%s278 + $0xc] sm:$0xf]
        %v311 = vld [vmem:[%s278 + $0x10] sm:$0xf]
        %v312 = vld [vmem:[%s278 + $0x14] sm:$0xf]
        %v313 = vld [vmem:[%s278 + $0x18] sm:$0xf]
        %v314 = vld [vmem:[%s278 + $0x1c] sm:$0xf]
        %v315 = vld [vmem:[%s278 + $0x20] sm:$0xf]
        %v316 = vld [vmem:[%s278 + $0x24] sm:$0xf]
        %v317 = vld [vmem:[%s278 + $0x28] sm:$0xf]
        %v318 = vld [vmem:[%s278 + $0x2c] sm:$0xf]
        %v319 = vld [vmem:[%s278 + $0x30] sm:$0xf]
        %v320 = vld [vmem:[%s278 + $0x34] sm:$0xf]
        %v321 = vld [vmem:[%s278 + $0x38] sm:$0xf]
        %v322 = vld [vmem:[%s278 + $0x3c] sm:$0xf]
        %v323 = vld [vmem:[#allocation4] sm:$0xff]
        %v324 = vld [vmem:[#allocation4 + $0x8] sm:$0xff]
        %v325 = vld [vmem:[#allocation4 + $0x10] sm:$0xff]
        %v326 = vld [vmem:[#allocation4 + $0x18] sm:$0xff]
        %v327 = vld [vmem:[#allocation4 + $0x20] sm:$0xff]
        %v328 = vld [vmem:[#allocation4 + $0x28] sm:$0xff]
        %v329 = vld [vmem:[#allocation4 + $0x30] sm:$0xff]
        %v330 = vld [vmem:[#allocation4 + $0x38] sm:$0xff]
        %v331 = vld [vmem:[#allocation4 + $0x40] sm:$0xff]
        %v332 = vld [vmem:[#allocation4 + $0x48] sm:$0xff]
        %v333 = vld [vmem:[#allocation4 + $0x50] sm:$0xff]
        %v334 = vld [vmem:[#allocation4 + $0x58] sm:$0xff]
        %v335 = vld [vmem:[#allocation4 + $0x60] sm:$0xff]
        %v336 = vld [vmem:[#allocation4 + $0x68] sm:$0xff]
        %v337 = vld [vmem:[#allocation4 + $0x70] sm:$0xff]
        %v338 = vld [vmem:[#allocation4 + $0x78] sm:$0xff]
        %v339 = vmul.f32 %v323, %v291
        %v340 = vmul.f32 %v324, %v292
        %v341 = vmul.f32 %v325, %v293
        %v342 = vmul.f32 %v326, %v294
        %v343 = vmul.f32 %v327, %v295
        %v344 = vmul.f32 %v328, %v296
        %v345 = vmul.f32 %v329, %v297
        %v346 = vmul.f32 %v330, %v298
        %v347 = vmul.f32 %v331, %v299
        %v348 = vmul.f32 %v332, %v300
        %v349 = vmul.f32 %v333, %v301
        %v350 = vmul.f32 %v334, %v302
        %v351 = vmul.f32 %v335, %v303
        %v352 = vmul.f32 %v336, %v304
        %v353 = vmul.f32 %v337, %v305
        %v354 = vmul.f32 %v338, %v306
        %v355 = vpack.c.bf16 %v340, %v339
        %v356 = vpack.c.bf16 %v342, %v341
        %v357 = vpack.c.bf16 %v344, %v343
        %v358 = vpack.c.bf16 %v346, %v345
        %v359 = vpack.c.bf16 %v348, %v347
        %v360 = vpack.c.bf16 %v350, %v349
        %v361 = vpack.c.bf16 %v352, %v351
        %v362 = vpack.c.bf16 %v354, %v353
        %v379 = vunpack.c.l.b16 %v307
        %v380 = vunpack.c.l.b16 %v308
        %v381 = vunpack.c.l.b16 %v309
        %v382 = vunpack.c.l.b16 %v310
        %v383 = vunpack.c.l.b16 %v311
        %v384 = vunpack.c.l.b16 %v312
        %v385 = vunpack.c.l.b16 %v313
        %v386 = vunpack.c.l.b16 %v314
        %v387 = vunpack.c.l.b16 %v315
        %v388 = vunpack.c.l.b16 %v316
        %v389 = vunpack.c.l.b16 %v317
        %v390 = vunpack.c.l.b16 %v318
        %v391 = vunpack.c.l.b16 %v319
        %v392 = vunpack.c.l.b16 %v320
        %v393 = vunpack.c.l.b16 %v321
        %v394 = vunpack.c.l.b16 %v322
        %v395 = vpack.c.b16 %v380, %v379
        %v396 = vpack.c.b16 %v382, %v381
        %v397 = vpack.c.b16 %v384, %v383
        %v398 = vpack.c.b16 %v386, %v385
        %v399 = vpack.c.b16 %v388, %v387
        %v400 = vpack.c.b16 %v390, %v389
        %v401 = vpack.c.b16 %v392, %v391
        %v402 = vpack.c.b16 %v394, %v393
        %411 = vmatprep.subr.bf16.mxu0 0
        %412 = vmatpush1.bf16.msra.mxu0 %v395
        %413 = vmatprep.subr.bf16.mxu0 0
        %414 = vmatpush1.bf16.msra.mxu0 %v396
        %415 = vmatprep.subr.bf16.mxu0 0
        %416 = vmatpush1.bf16.msra.mxu0 %v397
        %417 = vmatprep.subr.bf16.mxu0 0
        %418 = vmatpush1.bf16.msra.mxu0 %v398
        %419 = vmatprep.subr.bf16.mxu0 0
        %420 = vmatpush1.bf16.msra.mxu0 %v399
        %421 = vmatprep.subr.bf16.mxu0 0
        %422 = vmatpush1.bf16.msra.mxu0 %v400
        %423 = vmatprep.subr.bf16.mxu0 0
        %424 = vmatpush1.bf16.msra.mxu0 %v401
        %425 = vmatprep.subr.bf16.mxu0 0
        %426 = vmatpush1.bf16.msra.mxu0 %v402
        %427 = vmatprep.subr.bf16.mxu0 0
        %428 = vmatpush1.bf16.msra.mxu0 0
        %429 = vmatprep.subr.bf16.mxu0 0
        %430 = vmatpush1.bf16.msra.mxu0 0
        %431 = vmatprep.subr.bf16.mxu0 0
        %432 = vmatpush1.bf16.msra.mxu0 0
        %433 = vmatprep.subr.bf16.mxu0 0
        %434 = vmatpush1.bf16.msra.mxu0 0
        %435 = vmatprep.subr.bf16.mxu0 0
        %436 = vmatpush1.bf16.msra.mxu0 0
        %437 = vmatprep.subr.bf16.mxu0 0
        %438 = vmatpush1.bf16.msra.mxu0 0
        %439 = vmatprep.subr.bf16.mxu0 0
        %440 = vmatpush1.bf16.msra.mxu0 0
        %441 = vmatprep.subr.bf16.mxu0 0
        %442 = vmatpush1.bf16.msra.mxu0 0
        %443 = vmatprep.mubr.bf16.mxu0 0
        %444 = vmatmul.mubr.bf16.gmra.mrb[0].mxu0 %v355
        %v445 = vpop.f32.mrb[0].mxu0
        %v446 = vadd.f32 0.0, %v445
        %v447 = vpop.f32.mrb[0].mxu0
        %v448 = vpop.f32.mrb[0].mxu0
        %v449 = vadd.f32 0.0, %v448
        %v450 = vpop.f32.mrb[0].mxu0
        %451 = vmatprep.mubr.bf16.mxu0 0
        %452 = vmatmul.mubr.bf16.gmra.mrb[0].mxu0 %v356
        %v453 = vpop.f32.mrb[0].mxu0
        %v454 = vadd.f32 0.0, %v453
        %v455 = vpop.f32.mrb[0].mxu0
        %v456 = vpop.f32.mrb[0].mxu0
        %v457 = vadd.f32 0.0, %v456
        %v458 = vpop.f32.mrb[0].mxu0
        %459 = vmatprep.mubr.bf16.mxu0 0
        %460 = vmatmul.mubr.bf16.gmra.mrb[0].mxu0 %v357
        %v461 = vpop.f32.mrb[0].mxu0
        %v462 = vadd.f32 0.0, %v461
        %v463 = vpop.f32.mrb[0].mxu0
        %v464 = vpop.f32.mrb[0].mxu0
        %v465 = vadd.f32 0.0, %v464
        %v466 = vpop.f32.mrb[0].mxu0
        %467 = vmatprep.mubr.bf16.mxu0 0
        %468 = vmatmul.mubr.bf16.gmra.mrb[0].mxu0 %v358
        %v469 = vpop.f32.mrb[0].mxu0
        %v470 = vadd.f32 0.0, %v469
        %v471 = vpop.f32.mrb[0].mxu0
        %v472 = vpop.f32.mrb[0].mxu0
        %v473 = vadd.f32 0.0, %v472
        %v474 = vpop.f32.mrb[0].mxu0
        %475 = vmatprep.mubr.bf16.mxu0 0
        %476 = vmatmul.mubr.bf16.gmra.mrb[0].mxu0 %v359
        %v477 = vpop.f32.mrb[0].mxu0
        %v478 = vadd.f32 0.0, %v477
        %v479 = vpop.f32.mrb[0].mxu0
        %v480 = vpop.f32.mrb[0].mxu0
        %v481 = vadd.f32 0.0, %v480
        %v482 = vpop.f32.mrb[0].mxu0
        %483 = vmatprep.mubr.bf16.mxu0 0
        %484 = vmatmul.mubr.bf16.gmra.mrb[0].mxu0 %v360
        %v485 = vpop.f32.mrb[0].mxu0
        %v486 = vadd.f32 0.0, %v485
        %v487 = vpop.f32.mrb[0].mxu0
        %v488 = vpop.f32.mrb[0].mxu0
        %v489 = vadd.f32 0.0, %v488
        %v490 = vpop.f32.mrb[0].mxu0
        %491 = vmatprep.mubr.bf16.mxu0 0
        %492 = vmatmul.mubr.bf16.gmra.mrb[0].mxu0 %v361
        %v493 = vpop.f32.mrb[0].mxu0
        %v494 = vadd.f32 0.0, %v493
        %v495 = vpop.f32.mrb[0].mxu0
        %v496 = vpop.f32.mrb[0].mxu0
        %v497 = vadd.f32 0.0, %v496
        %v498 = vpop.f32.mrb[0].mxu0
        %499 = vmatprep.mubr.bf16.mxu0 0
        %500 = vmatmul.mubr.bf16.gmra.mrb[0].mxu0 %v362
        %v501 = vpop.f32.mrb[0].mxu0
        %v502 = vadd.f32 0.0, %v501
        %v503 = vpop.f32.mrb[0].mxu0
        %v504 = vpop.f32.mrb[0].mxu0
        %v505 = vadd.f32 0.0, %v504
        %v506 = vpop.f32.mrb[0].mxu0
        %507 = vdwg.mxu0
        %v508 = vpack.c.bf16 %v449, %v446
        %v509 = vpack.c.bf16 %v457, %v454
        %v510 = vpack.c.bf16 %v465, %v462
        %v511 = vpack.c.bf16 %v473, %v470
        %v512 = vpack.c.bf16 %v481, %v478
        %v513 = vpack.c.bf16 %v489, %v486
        %v514 = vpack.c.bf16 %v497, %v494
        %v515 = vpack.c.bf16 %v505, %v502
        %v516 = vld [vmem:[%s3] sm:$0xf]
        %v517 = vld [vmem:[%s3 + $0x4] sm:$0xf]
        %v518 = vld [vmem:[%s3 + $0x8] sm:$0xf]
        %v519 = vld [vmem:[%s3 + $0xc] sm:$0xf]
        %s520 = scalar_lea.vmem [#allocation4], 128
        %v521 = vld [vmem:[%s520] sm:$0xff]
        %v522 = vld [vmem:[%s520 + $0x8] sm:$0xff]
        %v523 = vld [vmem:[%s520 + $0x10] sm:$0xff]
        %v524 = vld [vmem:[%s520 + $0x18] sm:$0xff]
        %v525 = vld [vmem:[%s520 + $0x20] sm:$0xff]
        %v526 = vld [vmem:[%s520 + $0x28] sm:$0xff]
        %v527 = vld [vmem:[%s520 + $0x30] sm:$0xff]
        %v528 = vld [vmem:[%s520 + $0x38] sm:$0xff]
        %v529 = vld [vmem:[%s520 + $0x40] sm:$0xff]
        %v530 = vld [vmem:[%s520 + $0x48] sm:$0xff]
        %v531 = vld [vmem:[%s520 + $0x50] sm:$0xff]
        %v532 = vld [vmem:[%s520 + $0x58] sm:$0xff]
        %v533 = vld [vmem:[%s520 + $0x60] sm:$0xff]
        %v534 = vld [vmem:[%s520 + $0x68] sm:$0xff]
        %v535 = vld [vmem:[%s520 + $0x70] sm:$0xff]
        %v536 = vld [vmem:[%s520 + $0x78] sm:$0xff]
        %v537 = vmul.f32 %v521, %v291
        %v538 = vmul.f32 %v522, %v292
        %v539 = vmul.f32 %v523, %v293
        %v540 = vmul.f32 %v524, %v294
        %v541 = vmul.f32 %v525, %v295
        %v542 = vmul.f32 %v526, %v296
        %v543 = vmul.f32 %v527, %v297
        %v544 = vmul.f32 %v528, %v298
        %v545 = vmul.f32 %v529, %v299
        %v546 = vmul.f32 %v530, %v300
        %v547 = vmul.f32 %v531, %v301
        %v548 = vmul.f32 %v532, %v302
        %v549 = vmul.f32 %v533, %v303
        %v550 = vmul.f32 %v534, %v304
        %v551 = vmul.f32 %v535, %v305
        %v552 = vmul.f32 %v536, %v306
        %v553 = vpack.c.bf16 %v538, %v537
        %v554 = vpack.c.bf16 %v540, %v539
        %v555 = vpack.c.bf16 %v542, %v541
        %v556 = vpack.c.bf16 %v544, %v543
        %v557 = vpack.c.bf16 %v546, %v545
        %v558 = vpack.c.bf16 %v548, %v547
        %v559 = vpack.c.bf16 %v550, %v549
        %v560 = vpack.c.bf16 %v552, %v551
        %561 = vmatprep.subr.bf16.mxu0 0
        %562 = vmatpush1.bf16.msra.mxu0 %v395
        %563 = vmatprep.subr.bf16.mxu0 0
        %564 = vmatpush1.bf16.msra.mxu0 %v396
        %565 = vmatprep.subr.bf16.mxu0 0
        %566 = vmatpush1.bf16.msra.mxu0 %v397
        %567 = vmatprep.subr.bf16.mxu0 0
        %568 = vmatpush1.bf16.msra.mxu0 %v398
        %569 = vmatprep.subr.bf16.mxu0 0
        %570 = vmatpush1.bf16.msra.mxu0 %v399
        %571 = vmatprep.subr.bf16.mxu0 0
        %572 = vmatpush1.bf16.msra.mxu0 %v400
        %573 = vmatprep.subr.bf16.mxu0 0
        %574 = vmatpush1.bf16.msra.mxu0 %v401
        %575 = vmatprep.subr.bf16.mxu0 0
        %576 = vmatpush1.bf16.msra.mxu0 %v402
        %577 = vmatprep.subr.bf16.mxu0 0
        %578 = vmatpush1.bf16.msra.mxu0 0
        %579 = vmatprep.subr.bf16.mxu0 0
        %580 = vmatpush1.bf16.msra.mxu0 0
        %581 = vmatprep.subr.bf16.mxu0 0
        %582 = vmatpush1.bf16.msra.mxu0 0
        %583 = vmatprep.subr.bf16.mxu0 0
        %584 = vmatpush1.bf16.msra.mxu0 0
        %585 = vmatprep.subr.bf16.mxu0 0
        %586 = vmatpush1.bf16.msra.mxu0 0
        %587 = vmatprep.subr.bf16.mxu0 0
        %588 = vmatpush1.bf16.msra.mxu0 0
        %589 = vmatprep.subr.bf16.mxu0 0
        %590 = vmatpush1.bf16.msra.mxu0 0
        %591 = vmatprep.subr.bf16.mxu0 0
        %592 = vmatpush1.bf16.msra.mxu0 0
        %593 = vmatprep.mubr.bf16.mxu0 0
        %594 = vmatmul.mubr.bf16.gmra.mrb[0].mxu0 %v553
        %v595 = vpop.f32.mrb[0].mxu0
        %v596 = vadd.f32 0.0, %v595
        %v597 = vpop.f32.mrb[0].mxu0
        %v598 = vpop.f32.mrb[0].mxu0
        %v599 = vadd.f32 0.0, %v598
        %v600 = vpop.f32.mrb[0].mxu0
        %601 = vmatprep.mubr.bf16.mxu0 0
        %602 = vmatmul.mubr.bf16.gmra.mrb[0].mxu0 %v554
        %v603 = vpop.f32.mrb[0].mxu0
        %v604 = vadd.f32 0.0, %v603
        %v605 = vpop.f32.mrb[0].mxu0
        %v606 = vpop.f32.mrb[0].mxu0
        %v607 = vadd.f32 0.0, %v606
        %v608 = vpop.f32.mrb[0].mxu0
        %609 = vmatprep.mubr.bf16.mxu0 0
        %610 = vmatmul.mubr.bf16.gmra.mrb[0].mxu0 %v555
        %v611 = vpop.f32.mrb[0].mxu0
        %v612 = vadd.f32 0.0, %v611
        %v613 = vpop.f32.mrb[0].mxu0
        %v614 = vpop.f32.mrb[0].mxu0
        %v615 = vadd.f32 0.0, %v614
        %v616 = vpop.f32.mrb[0].mxu0
        %617 = vmatprep.mubr.bf16.mxu0 0
        %618 = vmatmul.mubr.bf16.gmra.mrb[0].mxu0 %v556
        %v619 = vpop.f32.mrb[0].mxu0
        %v620 = vadd.f32 0.0, %v619
        %v621 = vpop.f32.mrb[0].mxu0
        %v622 = vpop.f32.mrb[0].mxu0
        %v623 = vadd.f32 0.0, %v622
        %v624 = vpop.f32.mrb[0].mxu0
        %625 = vmatprep.mubr.bf16.mxu0 0
        %626 = vmatmul.mubr.bf16.gmra.mrb[0].mxu0 %v557
        %v627 = vpop.f32.mrb[0].mxu0
        %v628 = vadd.f32 0.0, %v627
        %v629 = vpop.f32.mrb[0].mxu0
        %v630 = vpop.f32.mrb[0].mxu0
        %v631 = vadd.f32 0.0, %v630
        %v632 = vpop.f32.mrb[0].mxu0
        %633 = vmatprep.mubr.bf16.mxu0 0
        %634 = vmatmul.mubr.bf16.gmra.mrb[0].mxu0 %v558
        %v635 = vpop.f32.mrb[0].mxu0
        %v636 = vadd.f32 0.0, %v635
        %v637 = vpop.f32.mrb[0].mxu0
        %v638 = vpop.f32.mrb[0].mxu0
        %v639 = vadd.f32 0.0, %v638
        %v640 = vpop.f32.mrb[0].mxu0
        %641 = vmatprep.mubr.bf16.mxu0 0
        %642 = vmatmul.mubr.bf16.gmra.mrb[0].mxu0 %v559
        %v643 = vpop.f32.mrb[0].mxu0
        %v644 = vadd.f32 0.0, %v643
        %v645 = vpop.f32.mrb[0].mxu0
        %v646 = vpop.f32.mrb[0].mxu0
        %v647 = vadd.f32 0.0, %v646
        %v648 = vpop.f32.mrb[0].mxu0
        %649 = vmatprep.mubr.bf16.mxu0 0
        %650 = vmatmul.mubr.bf16.gmra.mrb[0].mxu0 %v560
        %v651 = vpop.f32.mrb[0].mxu0
        %v652 = vadd.f32 0.0, %v651
        %v653 = vpop.f32.mrb[0].mxu0
        %v654 = vpop.f32.mrb[0].mxu0
        %v655 = vadd.f32 0.0, %v654
        %v656 = vpop.f32.mrb[0].mxu0
        %657 = vdwg.mxu0
        %v658 = vpack.c.bf16 %v599, %v596
        %v659 = vpack.c.bf16 %v607, %v604
        %v660 = vpack.c.bf16 %v615, %v612
        %v661 = vpack.c.bf16 %v623, %v620
        %v662 = vpack.c.bf16 %v631, %v628
        %v663 = vpack.c.bf16 %v639, %v636
        %v664 = vpack.c.bf16 %v647, %v644
        %v665 = vpack.c.bf16 %v655, %v652
        %s666 = scalar_lea.vmem %s3, 16
        %v667 = vld [vmem:[%s666] sm:$0xf]
        %v668 = vld [vmem:[%s666 + $0x4] sm:$0xf]
        %v669 = vld [vmem:[%s666 + $0x8] sm:$0xf]
        %v670 = vld [vmem:[%s666 + $0xc] sm:$0xf]
        %v675 = vunpack.c.l.b16 %v667
        %v676 = vunpack.c.l.b16 %v668
        %v677 = vunpack.c.l.b16 %v669
        %v678 = vunpack.c.l.b16 %v670
        %v679 = vpack.c.b16 %v676, %v675
        %v680 = vpack.c.b16 %v678, %v677
        %vm683 = vcmask 261120
        %v685 = vsel %vm683, %v658, 0
        %v688 = vsel %vm683, %v659, 0
        %v691 = vsel %vm683, %v660, 0
        %v694 = vsel %vm683, %v661, 0
        %v697 = vsel %vm683, %v662, 0
        %v700 = vsel %vm683, %v663, 0
        %v703 = vsel %vm683, %v664, 0
        %v706 = vsel %vm683, %v665, 0
        %708 = vmatprep.subr.bf16.mxu0 0
        %709 = vmatpush1.bf16.msra.mxu0 %v679
        %710 = vmatprep.subr.bf16.mxu0 0
        %711 = vmatpush1.bf16.msra.mxu0 %v680
        %712 = vmatprep.subr.bf16.mxu0 0
        %713 = vmatpush1.bf16.msra.mxu0 0
        %714 = vmatprep.subr.bf16.mxu0 0
        %715 = vmatpush1.bf16.msra.mxu0 0
        %716 = vmatprep.subr.bf16.mxu0 0
        %717 = vmatpush1.bf16.msra.mxu0 0
        %718 = vmatprep.subr.bf16.mxu0 0
        %719 = vmatpush1.bf16.msra.mxu0 0
        %720 = vmatprep.subr.bf16.mxu0 0
        %721 = vmatpush1.bf16.msra.mxu0 0
        %722 = vmatprep.subr.bf16.mxu0 0
        %723 = vmatpush1.bf16.msra.mxu0 0
        %724 = vmatprep.subr.bf16.mxu0 0
        %725 = vmatpush1.bf16.msra.mxu0 0
        %726 = vmatprep.subr.bf16.mxu0 0
        %727 = vmatpush1.bf16.msra.mxu0 0
        %728 = vmatprep.subr.bf16.mxu0 0
        %729 = vmatpush1.bf16.msra.mxu0 0
        %730 = vmatprep.subr.bf16.mxu0 0
        %731 = vmatpush1.bf16.msra.mxu0 0
        %732 = vmatprep.subr.bf16.mxu0 0
        %733 = vmatpush1.bf16.msra.mxu0 0
        %734 = vmatprep.subr.bf16.mxu0 0
        %735 = vmatpush1.bf16.msra.mxu0 0
        %736 = vmatprep.subr.bf16.mxu0 0
        %737 = vmatpush1.bf16.msra.mxu0 0
        %738 = vmatprep.subr.bf16.mxu0 0
        %739 = vmatpush1.bf16.msra.mxu0 0
        %740 = vmatprep.mubr.bf16.mxu0 0
        %741 = vmatmul.mubr.bf16.gmra.mrb[0].mxu0 %v685
        %v742 = vpop.f32.mrb[0].mxu0
        %v743 = vadd.f32 0.0, %v742
        %v744 = vpop.f32.mrb[0].mxu0
        %v745 = vpop.f32.mrb[0].mxu0
        %v746 = vadd.f32 0.0, %v745
        %v747 = vpop.f32.mrb[0].mxu0
        %748 = vmatprep.mubr.bf16.mxu0 0
        %749 = vmatmul.mubr.bf16.gmra.mrb[0].mxu0 %v688
        %v750 = vpop.f32.mrb[0].mxu0
        %v751 = vadd.f32 0.0, %v750
        %v752 = vpop.f32.mrb[0].mxu0
        %v753 = vpop.f32.mrb[0].mxu0
        %v754 = vadd.f32 0.0, %v753
        %v755 = vpop.f32.mrb[0].mxu0
        %756 = vmatprep.mubr.bf16.mxu0 0
        %757 = vmatmul.mubr.bf16.gmra.mrb[0].mxu0 %v691
        %v758 = vpop.f32.mrb[0].mxu0
        %v759 = vadd.f32 0.0, %v758
        %v760 = vpop.f32.mrb[0].mxu0
        %v761 = vpop.f32.mrb[0].mxu0
        %v762 = vadd.f32 0.0, %v761
        %v763 = vpop.f32.mrb[0].mxu0
        %764 = vmatprep.mubr.bf16.mxu0 0
        %765 = vmatmul.mubr.bf16.gmra.mrb[0].mxu0 %v694
        %v766 = vpop.f32.mrb[0].mxu0
        %v767 = vadd.f32 0.0, %v766
        %v768 = vpop.f32.mrb[0].mxu0
        %v769 = vpop.f32.mrb[0].mxu0
        %v770 = vadd.f32 0.0, %v769
        %v771 = vpop.f32.mrb[0].mxu0
        %772 = vmatprep.mubr.bf16.mxu0 0
        %773 = vmatmul.mubr.bf16.gmra.mrb[0].mxu0 %v697
        %v774 = vpop.f32.mrb[0].mxu0
        %v775 = vadd.f32 0.0, %v774
        %v776 = vpop.f32.mrb[0].mxu0
        %v777 = vpop.f32.mrb[0].mxu0
        %v778 = vadd.f32 0.0, %v777
        %v779 = vpop.f32.mrb[0].mxu0
        %780 = vmatprep.mubr.bf16.mxu0 0
        %781 = vmatmul.mubr.bf16.gmra.mrb[0].mxu0 %v700
        %v782 = vpop.f32.mrb[0].mxu0
        %v783 = vadd.f32 0.0, %v782
        %v784 = vpop.f32.mrb[0].mxu0
        %v785 = vpop.f32.mrb[0].mxu0
        %v786 = vadd.f32 0.0, %v785
        %v787 = vpop.f32.mrb[0].mxu0
        %788 = vmatprep.mubr.bf16.mxu0 0
        %789 = vmatmul.mubr.bf16.gmra.mrb[0].mxu0 %v703
        %v790 = vpop.f32.mrb[0].mxu0
        %v791 = vadd.f32 0.0, %v790
        %v792 = vpop.f32.mrb[0].mxu0
        %v793 = vpop.f32.mrb[0].mxu0
        %v794 = vadd.f32 0.0, %v793
        %v795 = vpop.f32.mrb[0].mxu0
        %796 = vmatprep.mubr.bf16.mxu0 0
        %797 = vmatmul.mubr.bf16.gmra.mrb[0].mxu0 %v706
        %v798 = vpop.f32.mrb[0].mxu0
        %v799 = vadd.f32 0.0, %v798
        %v800 = vpop.f32.mrb[0].mxu0
        %v801 = vpop.f32.mrb[0].mxu0
        %v802 = vadd.f32 0.0, %v801
        %v803 = vpop.f32.mrb[0].mxu0
        %804 = vdwg.mxu0
        %v809 = vunpack.c.l.b16 %v516
        %v810 = vunpack.c.l.b16 %v517
        %v811 = vunpack.c.l.b16 %v518
        %v812 = vunpack.c.l.b16 %v519
        %v813 = vpack.c.b16 %v810, %v809
        %v814 = vpack.c.b16 %v812, %v811
        %v818 = vsel %vm683, %v508, 0
        %v821 = vsel %vm683, %v509, 0
        %v824 = vsel %vm683, %v510, 0
        %v827 = vsel %vm683, %v511, 0
        %v830 = vsel %vm683, %v512, 0
        %v833 = vsel %vm683, %v513, 0
        %v836 = vsel %vm683, %v514, 0
        %v839 = vsel %vm683, %v515, 0
        %841 = vmatprep.subr.bf16.mxu0 0
        %842 = vmatpush1.bf16.msra.mxu0 %v813
        %843 = vmatprep.subr.bf16.mxu0 0
        %844 = vmatpush1.bf16.msra.mxu0 %v814
        %845 = vmatprep.subr.bf16.mxu0 0
        %846 = vmatpush1.bf16.msra.mxu0 0
        %847 = vmatprep.subr.bf16.mxu0 0
        %848 = vmatpush1.bf16.msra.mxu0 0
        %849 = vmatprep.subr.bf16.mxu0 0
        %850 = vmatpush1.bf16.msra.mxu0 0
        %851 = vmatprep.subr.bf16.mxu0 0
        %852 = vmatpush1.bf16.msra.mxu0 0
        %853 = vmatprep.subr.bf16.mxu0 0
        %854 = vmatpush1.bf16.msra.mxu0 0
        %855 = vmatprep.subr.bf16.mxu0 0
        %856 = vmatpush1.bf16.msra.mxu0 0
        %857 = vmatprep.subr.bf16.mxu0 0
        %858 = vmatpush1.bf16.msra.mxu0 0
        %859 = vmatprep.subr.bf16.mxu0 0
        %860 = vmatpush1.bf16.msra.mxu0 0
        %861 = vmatprep.subr.bf16.mxu0 0
        %862 = vmatpush1.bf16.msra.mxu0 0
        %863 = vmatprep.subr.bf16.mxu0 0
        %864 = vmatpush1.bf16.msra.mxu0 0
        %865 = vmatprep.subr.bf16.mxu0 0
        %866 = vmatpush1.bf16.msra.mxu0 0
        %867 = vmatprep.subr.bf16.mxu0 0
        %868 = vmatpush1.bf16.msra.mxu0 0
        %869 = vmatprep.subr.bf16.mxu0 0
        %870 = vmatpush1.bf16.msra.mxu0 0
        %871 = vmatprep.subr.bf16.mxu0 0
        %872 = vmatpush1.bf16.msra.mxu0 0
        %873 = vmatprep.mubr.bf16.mxu0 0
        %874 = vmatmul.mubr.bf16.gmra.mrb[0].mxu0 %v818
        %v875 = vpop.f32.mrb[0].mxu0
        %v876 = vadd.f32 %v743, %v875
        %v877 = vpop.f32.mrb[0].mxu0
        %v878 = vpop.f32.mrb[0].mxu0
        %v879 = vadd.f32 %v746, %v878
        %v880 = vpop.f32.mrb[0].mxu0
        %881 = vmatprep.mubr.bf16.mxu0 0
        %882 = vmatmul.mubr.bf16.gmra.mrb[0].mxu0 %v821
        %v883 = vpop.f32.mrb[0].mxu0
        %v884 = vadd.f32 %v751, %v883
        %v885 = vpop.f32.mrb[0].mxu0
        %v886 = vpop.f32.mrb[0].mxu0
        %v887 = vadd.f32 %v754, %v886
        %v888 = vpop.f32.mrb[0].mxu0
        %889 = vmatprep.mubr.bf16.mxu0 0
        %890 = vmatmul.mubr.bf16.gmra.mrb[0].mxu0 %v824
        %v891 = vpop.f32.mrb[0].mxu0
        %v892 = vadd.f32 %v759, %v891
        %v893 = vpop.f32.mrb[0].mxu0
        %v894 = vpop.f32.mrb[0].mxu0
        %v895 = vadd.f32 %v762, %v894
        %v896 = vpop.f32.mrb[0].mxu0
        %897 = vmatprep.mubr.bf16.mxu0 0
        %898 = vmatmul.mubr.bf16.gmra.mrb[0].mxu0 %v827
        %v899 = vpop.f32.mrb[0].mxu0
        %v900 = vadd.f32 %v767, %v899
        %v901 = vpop.f32.mrb[0].mxu0
        %v902 = vpop.f32.mrb[0].mxu0
        %v903 = vadd.f32 %v770, %v902
        %v904 = vpop.f32.mrb[0].mxu0
        %905 = vmatprep.mubr.bf16.mxu0 0
        %906 = vmatmul.mubr.bf16.gmra.mrb[0].mxu0 %v830
        %v907 = vpop.f32.mrb[0].mxu0
        %v908 = vadd.f32 %v775, %v907
        %v909 = vpop.f32.mrb[0].mxu0
        %v910 = vpop.f32.mrb[0].mxu0
        %v911 = vadd.f32 %v778, %v910
        %v912 = vpop.f32.mrb[0].mxu0
        %913 = vmatprep.mubr.bf16.mxu0 0
        %914 = vmatmul.mubr.bf16.gmra.mrb[0].mxu0 %v833
        %v915 = vpop.f32.mrb[0].mxu0
        %v916 = vadd.f32 %v783, %v915
        %v917 = vpop.f32.mrb[0].mxu0
        %v918 = vpop.f32.mrb[0].mxu0
        %v919 = vadd.f32 %v786, %v918
        %v920 = vpop.f32.mrb[0].mxu0
        %921 = vmatprep.mubr.bf16.mxu0 0
        %922 = vmatmul.mubr.bf16.gmra.mrb[0].mxu0 %v836
        %v923 = vpop.f32.mrb[0].mxu0
        %v924 = vadd.f32 %v791, %v923
        %v925 = vpop.f32.mrb[0].mxu0
        %v926 = vpop.f32.mrb[0].mxu0
        %v927 = vadd.f32 %v794, %v926
        %v928 = vpop.f32.mrb[0].mxu0
        %929 = vmatprep.mubr.bf16.mxu0 0
        %930 = vmatmul.mubr.bf16.gmra.mrb[0].mxu0 %v839
        %v931 = vpop.f32.mrb[0].mxu0
        %v932 = vadd.f32 %v799, %v931
        %v933 = vpop.f32.mrb[0].mxu0
        %v934 = vpop.f32.mrb[0].mxu0
        %v935 = vadd.f32 %v802, %v934
        %v936 = vpop.f32.mrb[0].mxu0
        %937 = vdwg.mxu0
        %s938 = scalar_lea.vmem [#allocation4], 256
        %v939 = vld [vmem:[%s938] sm:$0xff]
        %v940 = vld [vmem:[%s938 + $0x8] sm:$0xff]
        %v941 = vld [vmem:[%s938 + $0x10] sm:$0xff]
        %v942 = vld [vmem:[%s938 + $0x18] sm:$0xff]
        %v943 = vld [vmem:[%s938 + $0x20] sm:$0xff]
        %v944 = vld [vmem:[%s938 + $0x28] sm:$0xff]
        %v945 = vld [vmem:[%s938 + $0x30] sm:$0xff]
        %v946 = vld [vmem:[%s938 + $0x38] sm:$0xff]
        %v947 = vld [vmem:[%s938 + $0x40] sm:$0xff]
        %v948 = vld [vmem:[%s938 + $0x48] sm:$0xff]
        %v949 = vld [vmem:[%s938 + $0x50] sm:$0xff]
        %v950 = vld [vmem:[%s938 + $0x58] sm:$0xff]
        %v951 = vld [vmem:[%s938 + $0x60] sm:$0xff]
        %v952 = vld [vmem:[%s938 + $0x68] sm:$0xff]
        %v953 = vld [vmem:[%s938 + $0x70] sm:$0xff]
        %v954 = vld [vmem:[%s938 + $0x78] sm:$0xff]
        %v955 = vmul.f32 %v939, %v291
        %v956 = vmul.f32 %v940, %v292
        %v957 = vmul.f32 %v941, %v293
        %v958 = vmul.f32 %v942, %v294
        %v959 = vmul.f32 %v943, %v295
        %v960 = vmul.f32 %v944, %v296
        %v961 = vmul.f32 %v945, %v297
        %v962 = vmul.f32 %v946, %v298
        %v963 = vmul.f32 %v947, %v299
        %v964 = vmul.f32 %v948, %v300
        %v965 = vmul.f32 %v949, %v301
        %v966 = vmul.f32 %v950, %v302
        %v967 = vmul.f32 %v951, %v303
        %v968 = vmul.f32 %v952, %v304
        %v969 = vmul.f32 %v953, %v305
        %v970 = vmul.f32 %v954, %v306
        %v971 = vpack.c.bf16 %v956, %v955
        %v972 = vpack.c.bf16 %v958, %v957
        %v973 = vpack.c.bf16 %v960, %v959
        %v974 = vpack.c.bf16 %v962, %v961
        %v975 = vpack.c.bf16 %v964, %v963
        %v976 = vpack.c.bf16 %v966, %v965
        %v977 = vpack.c.bf16 %v968, %v967
        %v978 = vpack.c.bf16 %v970, %v969
        %979 = vmatprep.subr.bf16.mxu0 0
        %980 = vmatpush1.bf16.msra.mxu0 %v395
        %981 = vmatprep.subr.bf16.mxu0 0
        %982 = vmatpush1.bf16.msra.mxu0 %v396
        %983 = vmatprep.subr.bf16.mxu0 0
        %984 = vmatpush1.bf16.msra.mxu0 %v397
        %985 = vmatprep.subr.bf16.mxu0 0
        %986 = vmatpush1.bf16.msra.mxu0 %v398
        %987 = vmatprep.subr.bf16.mxu0 0
        %988 = vmatpush1.bf16.msra.mxu0 %v399
        %989 = vmatprep.subr.bf16.mxu0 0
        %990 = vmatpush1.bf16.msra.mxu0 %v400
        %991 = vmatprep.subr.bf16.mxu0 0
        %992 = vmatpush1.bf16.msra.mxu0 %v401
        %993 = vmatprep.subr.bf16.mxu0 0
        %994 = vmatpush1.bf16.msra.mxu0 %v402
        %995 = vmatprep.subr.bf16.mxu0 0
        %996 = vmatpush1.bf16.msra.mxu0 0
        %997 = vmatprep.subr.bf16.mxu0 0
        %998 = vmatpush1.bf16.msra.mxu0 0
        %999 = vmatprep.subr.bf16.mxu0 0
        %1000 = vmatpush1.bf16.msra.mxu0 0
        %1001 = vmatprep.subr.bf16.mxu0 0
        %1002 = vmatpush1.bf16.msra.mxu0 0
        %1003 = vmatprep.subr.bf16.mxu0 0
        %1004 = vmatpush1.bf16.msra.mxu0 0
        %1005 = vmatprep.subr.bf16.mxu0 0
        %1006 = vmatpush1.bf16.msra.mxu0 0
        %1007 = vmatprep.subr.bf16.mxu0 0
        %1008 = vmatpush1.bf16.msra.mxu0 0
        %1009 = vmatprep.subr.bf16.mxu0 0
        %1010 = vmatpush1.bf16.msra.mxu0 0
        %1011 = vmatprep.mubr.bf16.mxu0 0
        %1012 = vmatmul.mubr.bf16.gmra.mrb[0].mxu0 %v971
        %v1013 = vpop.f32.mrb[0].mxu0
        %v1014 = vadd.f32 0.0, %v1013
        %v1015 = vpop.f32.mrb[0].mxu0
        %v1016 = vpop.f32.mrb[0].mxu0
        %v1017 = vadd.f32 0.0, %v1016
        %v1018 = vpop.f32.mrb[0].mxu0
        %1019 = vmatprep.mubr.bf16.mxu0 0
        %1020 = vmatmul.mubr.bf16.gmra.mrb[0].mxu0 %v972
        %v1021 = vpop.f32.mrb[0].mxu0
        %v1022 = vadd.f32 0.0, %v1021
        %v1023 = vpop.f32.mrb[0].mxu0
        %v1024 = vpop.f32.mrb[0].mxu0
        %v1025 = vadd.f32 0.0, %v1024
        %v1026 = vpop.f32.mrb[0].mxu0
        %1027 = vmatprep.mubr.bf16.mxu0 0
        %1028 = vmatmul.mubr.bf16.gmra.mrb[0].mxu0 %v973
        %v1029 = vpop.f32.mrb[0].mxu0
        %v1030 = vadd.f32 0.0, %v1029
        %v1031 = vpop.f32.mrb[0].mxu0
        %v1032 = vpop.f32.mrb[0].mxu0
        %v1033 = vadd.f32 0.0, %v1032
        %v1034 = vpop.f32.mrb[0].mxu0
        %1035 = vmatprep.mubr.bf16.mxu0 0
        %1036 = vmatmul.mubr.bf16.gmra.mrb[0].mxu0 %v974
        %v1037 = vpop.f32.mrb[0].mxu0
        %v1038 = vadd.f32 0.0, %v1037
        %v1039 = vpop.f32.mrb[0].mxu0
        %v1040 = vpop.f32.mrb[0].mxu0
        %v1041 = vadd.f32 0.0, %v1040
        %v1042 = vpop.f32.mrb[0].mxu0
        %1043 = vmatprep.mubr.bf16.mxu0 0
        %1044 = vmatmul.mubr.bf16.gmra.mrb[0].mxu0 %v975
        %v1045 = vpop.f32.mrb[0].mxu0
        %v1046 = vadd.f32 0.0, %v1045
        %v1047 = vpop.f32.mrb[0].mxu0
        %v1048 = vpop.f32.mrb[0].mxu0
        %v1049 = vadd.f32 0.0, %v1048
        %v1050 = vpop.f32.mrb[0].mxu0
        %1051 = vmatprep.mubr.bf16.mxu0 0
        %1052 = vmatmul.mubr.bf16.gmra.mrb[0].mxu0 %v976
        %v1053 = vpop.f32.mrb[0].mxu0
        %v1054 = vadd.f32 0.0, %v1053
        %v1055 = vpop.f32.mrb[0].mxu0
        %v1056 = vpop.f32.mrb[0].mxu0
        %v1057 = vadd.f32 0.0, %v1056
        %v1058 = vpop.f32.mrb[0].mxu0
        %1059 = vmatprep.mubr.bf16.mxu0 0
        %1060 = vmatmul.mubr.bf16.gmra.mrb[0].mxu0 %v977
        %v1061 = vpop.f32.mrb[0].mxu0
        %v1062 = vadd.f32 0.0, %v1061
        %v1063 = vpop.f32.mrb[0].mxu0
        %v1064 = vpop.f32.mrb[0].mxu0
        %v1065 = vadd.f32 0.0, %v1064
        %v1066 = vpop.f32.mrb[0].mxu0
        %1067 = vmatprep.mubr.bf16.mxu0 0
        %1068 = vmatmul.mubr.bf16.gmra.mrb[0].mxu0 %v978
        %v1069 = vpop.f32.mrb[0].mxu0
        %v1070 = vadd.f32 0.0, %v1069
        %v1071 = vpop.f32.mrb[0].mxu0
        %v1072 = vpop.f32.mrb[0].mxu0
        %v1073 = vadd.f32 0.0, %v1072
        %v1074 = vpop.f32.mrb[0].mxu0
        %1075 = vdwg.mxu0
        %v1076 = vpack.c.bf16 %v1017, %v1014
        %v1077 = vpack.c.bf16 %v1025, %v1022
        %v1078 = vpack.c.bf16 %v1033, %v1030
        %v1079 = vpack.c.bf16 %v1041, %v1038
        %v1080 = vpack.c.bf16 %v1049, %v1046
        %v1081 = vpack.c.bf16 %v1057, %v1054
        %v1082 = vpack.c.bf16 %v1065, %v1062
        %v1083 = vpack.c.bf16 %v1073, %v1070
        %s1084 = scalar_lea.vmem %s3, 32
        %v1085 = vld [vmem:[%s1084] sm:$0xf]
        %v1086 = vld [vmem:[%s1084 + $0x4] sm:$0xf]
        %v1087 = vld [vmem:[%s1084 + $0x8] sm:$0xf]
        %v1088 = vld [vmem:[%s1084 + $0xc] sm:$0xf]
        %v1093 = vunpack.c.l.b16 %v1085
        %v1094 = vunpack.c.l.b16 %v1086
        %v1095 = vunpack.c.l.b16 %v1087
        %v1096 = vunpack.c.l.b16 %v1088
        %v1097 = vpack.c.b16 %v1094, %v1093
        %v1098 = vpack.c.b16 %v1096, %v1095
        %v1102 = vsel %vm683, %v1076, 0
        %v1105 = vsel %vm683, %v1077, 0
        %v1108 = vsel %vm683, %v1078, 0
        %v1111 = vsel %vm683, %v1079, 0
        %v1114 = vsel %vm683, %v1080, 0
        %v1117 = vsel %vm683, %v1081, 0
        %v1120 = vsel %vm683, %v1082, 0
        %v1123 = vsel %vm683, %v1083, 0
        %1125 = vmatprep.subr.bf16.mxu0 0
        %1126 = vmatpush1.bf16.msra.mxu0 %v1097
        %1127 = vmatprep.subr.bf16.mxu0 0
        %1128 = vmatpush1.bf16.msra.mxu0 %v1098
        %1129 = vmatprep.subr.bf16.mxu0 0
        %1130 = vmatpush1.bf16.msra.mxu0 0
        %1131 = vmatprep.subr.bf16.mxu0 0
        %1132 = vmatpush1.bf16.msra.mxu0 0
        %1133 = vmatprep.subr.bf16.mxu0 0
        %1134 = vmatpush1.bf16.msra.mxu0 0
        %1135 = vmatprep.subr.bf16.mxu0 0
        %1136 = vmatpush1.bf16.msra.mxu0 0
        %1137 = vmatprep.subr.bf16.mxu0 0
        %1138 = vmatpush1.bf16.msra.mxu0 0
        %1139 = vmatprep.subr.bf16.mxu0 0
        %1140 = vmatpush1.bf16.msra.mxu0 0
        %1141 = vmatprep.subr.bf16.mxu0 0
        %1142 = vmatpush1.bf16.msra.mxu0 0
        %1143 = vmatprep.subr.bf16.mxu0 0
        %1144 = vmatpush1.bf16.msra.mxu0 0
        %1145 = vmatprep.subr.bf16.mxu0 0
        %1146 = vmatpush1.bf16.msra.mxu0 0
        %1147 = vmatprep.subr.bf16.mxu0 0
        %1148 = vmatpush1.bf16.msra.mxu0 0
        %1149 = vmatprep.subr.bf16.mxu0 0
        %1150 = vmatpush1.bf16.msra.mxu0 0
        %1151 = vmatprep.subr.bf16.mxu0 0
        %1152 = vmatpush1.bf16.msra.mxu0 0
        %1153 = vmatprep.subr.bf16.mxu0 0
        %1154 = vmatpush1.bf16.msra.mxu0 0
        %1155 = vmatprep.subr.bf16.mxu0 0
        %1156 = vmatpush1.bf16.msra.mxu0 0
        %1157 = vmatprep.mubr.bf16.mxu0 0
        %1158 = vmatmul.mubr.bf16.gmra.mrb[0].mxu0 %v1102
        %v1159 = vpop.f32.mrb[0].mxu0
        %v1160 = vadd.f32 0.0, %v1159
        %v1161 = vpop.f32.mrb[0].mxu0
        %v1162 = vpop.f32.mrb[0].mxu0
        %v1163 = vadd.f32 0.0, %v1162
        %v1164 = vpop.f32.mrb[0].mxu0
        %1165 = vmatprep.mubr.bf16.mxu0 0
        %1166 = vmatmul.mubr.bf16.gmra.mrb[0].mxu0 %v1105
        %v1167 = vpop.f32.mrb[0].mxu0
        %v1168 = vadd.f32 0.0, %v1167
        %v1169 = vpop.f32.mrb[0].mxu0
        %v1170 = vpop.f32.mrb[0].mxu0
        %v1171 = vadd.f32 0.0, %v1170
        %v1172 = vpop.f32.mrb[0].mxu0
        %1173 = vmatprep.mubr.bf16.mxu0 0
        %1174 = vmatmul.mubr.bf16.gmra.mrb[0].mxu0 %v1108
        %v1175 = vpop.f32.mrb[0].mxu0
        %v1176 = vadd.f32 0.0, %v1175
        %v1177 = vpop.f32.mrb[0].mxu0
        %v1178 = vpop.f32.mrb[0].mxu0
        %v1179 = vadd.f32 0.0, %v1178
        %v1180 = vpop.f32.mrb[0].mxu0
        %1181 = vmatprep.mubr.bf16.mxu0 0
        %1182 = vmatmul.mubr.bf16.gmra.mrb[0].mxu0 %v1111
        %v1183 = vpop.f32.mrb[0].mxu0
        %v1184 = vadd.f32 0.0, %v1183
        %v1185 = vpop.f32.mrb[0].mxu0
        %v1186 = vpop.f32.mrb[0].mxu0
        %v1187 = vadd.f32 0.0, %v1186
        %v1188 = vpop.f32.mrb[0].mxu0
        %1189 = vmatprep.mubr.bf16.mxu0 0
        %1190 = vmatmul.mubr.bf16.gmra.mrb[0].mxu0 %v1114
        %v1191 = vpop.f32.mrb[0].mxu0
        %v1192 = vadd.f32 0.0, %v1191
        %v1193 = vpop.f32.mrb[0].mxu0
        %v1194 = vpop.f32.mrb[0].mxu0
        %v1195 = vadd.f32 0.0, %v1194
        %v1196 = vpop.f32.mrb[0].mxu0
        %1197 = vmatprep.mubr.bf16.mxu0 0
        %1198 = vmatmul.mubr.bf16.gmra.mrb[0].mxu0 %v1117
        %v1199 = vpop.f32.mrb[0].mxu0
        %v1200 = vadd.f32 0.0, %v1199
        %v1201 = vpop.f32.mrb[0].mxu0
        %v1202 = vpop.f32.mrb[0].mxu0
        %v1203 = vadd.f32 0.0, %v1202
        %v1204 = vpop.f32.mrb[0].mxu0
        %1205 = vmatprep.mubr.bf16.mxu0 0
        %1206 = vmatmul.mubr.bf16.gmra.mrb[0].mxu0 %v1120
        %v1207 = vpop.f32.mrb[0].mxu0
        %v1208 = vadd.f32 0.0, %v1207
        %v1209 = vpop.f32.mrb[0].mxu0
        %v1210 = vpop.f32.mrb[0].mxu0
        %v1211 = vadd.f32 0.0, %v1210
        %v1212 = vpop.f32.mrb[0].mxu0
        %1213 = vmatprep.mubr.bf16.mxu0 0
        %1214 = vmatmul.mubr.bf16.gmra.mrb[0].mxu0 %v1123
        %v1215 = vpop.f32.mrb[0].mxu0
        %v1216 = vadd.f32 0.0, %v1215
        %v1217 = vpop.f32.mrb[0].mxu0
        %v1218 = vpop.f32.mrb[0].mxu0
        %v1219 = vadd.f32 0.0, %v1218
        %v1220 = vpop.f32.mrb[0].mxu0
        %1221 = vdwg.mxu0
        %v1222 = vadd.f32 %v876, %v1160
        %v1223 = vadd.f32 %v879, %v1163
        %v1224 = vadd.f32 %v884, %v1168
        %v1225 = vadd.f32 %v887, %v1171
        %v1226 = vadd.f32 %v892, %v1176
        %v1227 = vadd.f32 %v895, %v1179
        %v1228 = vadd.f32 %v900, %v1184
        %v1229 = vadd.f32 %v903, %v1187
        %v1230 = vadd.f32 %v908, %v1192
        %v1231 = vadd.f32 %v911, %v1195
        %v1232 = vadd.f32 %v916, %v1200
        %v1233 = vadd.f32 %v919, %v1203
        %v1234 = vadd.f32 %v924, %v1208
        %v1235 = vadd.f32 %v927, %v1211
        %v1236 = vadd.f32 %v932, %v1216
        %v1237 = vadd.f32 %v935, %v1219
        %v1238 = vmax.f32 %v1222, 0.0
        %v1239 = vmax.f32 %v1223, 0.0
        %v1240 = vmax.f32 %v1224, 0.0
        %v1241 = vmax.f32 %v1225, 0.0
        %v1242 = vmax.f32 %v1226, 0.0
        %v1243 = vmax.f32 %v1227, 0.0
        %v1244 = vmax.f32 %v1228, 0.0
        %v1245 = vmax.f32 %v1229, 0.0
        %v1246 = vmax.f32 %v1230, 0.0
        %v1247 = vmax.f32 %v1231, 0.0
        %v1248 = vmax.f32 %v1232, 0.0
        %v1249 = vmax.f32 %v1233, 0.0
        %v1250 = vmax.f32 %v1234, 0.0
        %v1251 = vmax.f32 %v1235, 0.0
        %v1252 = vmax.f32 %v1236, 0.0
        %v1253 = vmax.f32 %v1237, 0.0
        %vm1254 = vcmask 523264
        %1255 = vst.msk [vmem:[%s288] sm:$0xff] %vm1254, %v1238
        %1256 = vst.msk [vmem:[%s288 + $0x8] sm:$0xff] %vm1254, %v1239
        %1257 = vst.msk [vmem:[%s288 + $0x10] sm:$0xff] %vm1254, %v1240
        %1258 = vst.msk [vmem:[%s288 + $0x18] sm:$0xff] %vm1254, %v1241
        %1259 = vst.msk [vmem:[%s288 + $0x20] sm:$0xff] %vm1254, %v1242
        %1260 = vst.msk [vmem:[%s288 + $0x28] sm:$0xff] %vm1254, %v1243
        %1261 = vst.msk [vmem:[%s288 + $0x30] sm:$0xff] %vm1254, %v1244
        %1262 = vst.msk [vmem:[%s288 + $0x38] sm:$0xff] %vm1254, %v1245
        %1263 = vst.msk [vmem:[%s288 + $0x40] sm:$0xff] %vm1254, %v1246
        %1264 = vst.msk [vmem:[%s288 + $0x48] sm:$0xff] %vm1254, %v1247
        %1265 = vst.msk [vmem:[%s288 + $0x50] sm:$0xff] %vm1254, %v1248
        %1266 = vst.msk [vmem:[%s288 + $0x58] sm:$0xff] %vm1254, %v1249
        %1267 = vst.msk [vmem:[%s288 + $0x60] sm:$0xff] %vm1254, %v1250
        %1268 = vst.msk [vmem:[%s288 + $0x68] sm:$0xff] %vm1254, %v1251
        %1269 = vst.msk [vmem:[%s288 + $0x70] sm:$0xff] %vm1254, %v1252
        %1270 = vst.msk [vmem:[%s288 + $0x78] sm:$0xff] %vm1254, %v1253
        %s1271 = smul.u32 16, %s24
        %p1272 = scmp.lt.s32.totalorder %s23, 1
        %s1273 = scalar_select %p1272, %s23, 1
        %p1274 = scmp.lt.s32.totalorder %s1271, 15
        %s1275 = scalar_select %p1274, %s1271, 15
        %s1276 = smul.addr %s1273, 16
        %s1277 = sadd.s32 %s1275, %s1276
        %s1278 = smul.addr %s1277, 8
        %s1279 = scalar_lea.vmem %s4, %s1278
        // Predicated region
        $region45: #{tpu_custom_call.1} parent=35 // pred_check
          %p1280 = pneg %p152
        $region46: #{tpu_custom_call.1} parent=35 // pred_check_branch
          %1282 = sbr.rel (%p1280) target = $region48
        $region47: #{tpu_custom_call.1} parent=35 // pred_region
          %s1283 = smul.u32 16, %s24
        $region48: #{tpu_custom_call.1} parent=35 // pred_fallthru
          _
      $region36: #{tpu_custom_call.1} parent=5 // pred_fallthru
        _
      %p1284 = scmp.le.s32.totalorder 2, %s14
      // Predicated region
      $region49: #{tpu_custom_call.1} parent=5 // pred_check
        %p1285 = pneg %p1284
      $region50: #{tpu_custom_call.1} parent=5 // pred_check_branch
        %1287 = sbr.rel (%p1285) target = $region52
      $region51: #{tpu_custom_call.1} parent=5 // pred_region
        %s1288 = ssub.s32 %s14, 2
        // Predicated region
        $region53: #{tpu_custom_call.1} parent=51 // pred_check
          %p1289 = pneg %p158
        $region54: #{tpu_custom_call.1} parent=51 // pred_check_branch
          %1291 = sbr.rel (%p1289) target = $region56
        $region55: #{tpu_custom_call.1} parent=51 // pred_region
          %s1292 = smul.u32 16, %s26
          %p1293 = scmp.lt.s32.totalorder %s25, 1
          %s1294 = scalar_select %p1293, %s25, 1
          %p1295 = scmp.lt.s32.totalorder %s1292, 15
          %s1296 = scalar_select %p1295, %s1292, 15
          %s1297 = smul.addr %s1294, 16
          %s1298 = sadd.s32 %s1296, %s1297
          %s1299 = smul.addr %s1298, 8
          %s1300 = scalar_lea.vmem %s4, %s1299
        $region56: #{tpu_custom_call.1} parent=51 // pred_fallthru
          _
      $region52: #{tpu_custom_call.1} parent=5 // pred_fallthru
        _
    $region6: #{tpu_custom_call.1} parent=1 // loop_footer
      %s18 = sadd.s32 1, %s14
    $region7: #{tpu_custom_call.1} parent=1 // loop_footer_branch
      %13 = sbr.rel target = $region3
    $region8: #{tpu_custom_call.1} parent=1 // loop_exit
      _
    %1301 = vsyncpa [#allocation3], 1
    %s1302 = scalar_lea.sflag [#allocation3], 1
    %1303 = vsyncpa %s1302, 1
    %1304 = vsyncpa [#allocation5], 1

// kernel: tpu_custom_call.1
$region0: #{tpu_custom_call.1}
  #allocation0 [shape = 'u32[]', space=smem, size = 0x4, offset = 0x4, fixed_abs, tag = 'smem constant byte address 0x4 - core index']
  #allocation1 [shape = 'u32[144,128]{1,0:T(1,128)}', space=vmem, size = 0x12000, scoped, tag = 'internal scratch']
  %s0 = inlined_call_operand.hbm [shape: f32[2,128,128], index: 0, kind: input, shape index: {}]
  %s1 = inlined_call_operand.vmem [shape: bf16[2,128,32], index: 1, kind: input, shape index: {}]
  %s2 = inlined_call_operand.hbm [shape: f32[3,128,128], index: 2, kind: input, shape index: {}]
  %s3 = inlined_call_operand.vmem [shape: bf16[3,32,64], index: 3, kind: input, shape index: {}]
  %s4 = inlined_call_operand.vmem [shape: f32[2,128,64], index: 4, kind: output, shape index: {}]
  %s5 = sld [smem:[#allocation0]]
  $region57: #{tpu_custom_call.1} parent=0
    _
  %s7 = ssub.s32 1, %s5
  %s8 = scalar_select 0, %s7, %s5
  $region1: #{tpu_custom_call.1} parent=0
    #allocation2 [shape = 'u8[131072]{0}', space=vmem, size = 0x20000, scoped, tag = 'input window, operand 0']
    #allocation3 [shape = 's32[2]{0}', space=sflag, size = 0x8, scoped, tag = 'scoped memory for tpu_custom_call.1']
    #allocation4 [shape = 'u8[196608]{0}', space=vmem, size = 0x30000, scoped, tag = 'input window, operand 2, single buffered']
    #allocation5 [shape = 's32[1]{0}', space=sflag, size = 0x4, scoped, tag = 'scoped memory for tpu_custom_call.1']
    %9 = vsyncpa [#allocation3], 0
    %s10 = scalar_lea.sflag [#allocation3], 1
    %11 = vsyncpa %s10, 0
    %12 = vsyncpa [#allocation5], 0
    loop: start=0, step=1, limit=4
    $region2: #{tpu_custom_call.1} parent=1 // loop_pre_header
      _
    $region3: #{tpu_custom_call.1} parent=1 // loop_header
      %s14 = sphi 0, %s18
      %p15 = scmp.ge.s32.totalorder %s14, 4
      %s21 = sphi 0, %s33
      %s22 = sphi 0, %s29
      %s23 = sphi 0, %s21
      %s24 = sphi 0, %s22
      %s25 = sphi 0, %s23
      %s26 = sphi 0, %s24
      %s38 = sphi 0, %s40
      %s41 = sphi 0, %s38
      %s42 = sphi 0, %s41
      %s58 = sphi 0, %s42
      %s64 = sphi 0, %s66
      %s67 = sphi 0, %s64
      %s68 = sphi 0, %s67
      %s84 = sphi 0, %s68
      %s90 = sphi 0, %s92
      %s93 = sphi 0, %s90
      %s94 = sphi 0, %s93
      %s110 = sphi 0, %s94
      %s114 = sphi 0, %s114
      %s116 = sphi 0, %s114
      %s117 = sphi 0, %s116
      %s131 = sphi 0, %s117
      %s139 = sphi 0, %s141
      %s142 = sphi 0, %s139
      %s143 = sphi 0, %s142
      %s159 = sphi 0, %s143
    $region4: #{tpu_custom_call.1} parent=1 // loop_header_branch
      %17 = sbr.rel (%p15) target = $region8
    $region5: #{tpu_custom_call.1} parent=1 // loop_body
      %s19 = ssub.s32 %s14, 1
      %s20 = ssub.s32 %s14, 2
      %s27 = sadd.s32 1, %s22
      %p28 = scmp.ge.s32.totalorder %s27, 1
      %s29 = scalar_select %p28, 0, %s27
      %s30 = sadd.s32 1, %s21
      %s31 = scalar_select %p28, %s30, %s21
      %p32 = scmp.ge.s32.totalorder %s31, 2
      %s33 = scalar_select %p32, 0, %s31
      %s34 = ssub.s32 %s21, %s33
      %s35 = ssub.s32 %s22, %s29
      %s36 = sor.u32 %s34, %s35
      %p37 = scmp.eq.s32.totalorder %s36, 0
      %s39 = sadd.s32 %s38, 1
      %s40 = scalar_select %p37, %s38, %s39
      %p43 = pneg %p37
      %p44 = scmp.eq.s32.totalorder %s14, 1
      %p45 = por %p43, %p44
      %p46 = scmp.ne.s32.totalorder %s38, %s41
      %p47 = scmp.eq.s32.totalorder %s14, 0
      %p48 = por %p46, %p47
      %p49 = scmp.ne.s32.totalorder %s38, %s41
      %p50 = scmp.eq.s32.totalorder %s19, 1
      %p51 = por %p49, %p50
      %p52 = scmp.ne.s32.totalorder %s41, %s42
      %p53 = scmp.eq.s32.totalorder %s19, 0
      %p54 = por %p52, %p53
      %p55 = scmp.ne.s32.totalorder %s41, %s42
      %p56 = scmp.eq.s32.totalorder %s20, 1
      %p57 = por %p55, %p56
      %p59 = scmp.ne.s32.totalorder %s42, %s58
      %p60 = scmp.eq.s32.totalorder %s20, 0
      %p61 = por %p59, %p60
      %s62 = ssub.s32 %s21, %s33
      %p63 = scmp.eq.s32.totalorder %s62, 0
      %s65 = sadd.s32 %s64, 1
      %s66 = scalar_select %p63, %s64, %s65
      %p69 = pneg %p63
      %p70 = scmp.eq.s32.totalorder %s14, 1
      %p71 = por %p69, %p70
      %p72 = scmp.ne.s32.totalorder %s64, %s67
      %p73 = scmp.eq.s32.totalorder %s14, 0
      %p74 = por %p72, %p73
      %p75 = scmp.ne.s32.totalorder %s64, %s67
      %p76 = scmp.eq.s32.totalorder %s19, 1
      %p77 = por %p75, %p76
      %p78 = scmp.ne.s32.totalorder %s67, %s68
      %p79 = scmp.eq.s32.totalorder %s19, 0
      %p80 = por %p78, %p79
      %p81 = scmp.ne.s32.totalorder %s67, %s68
      %p82 = scmp.eq.s32.totalorder %s20, 1
      %p83 = por %p81, %p82
      %p85 = scmp.ne.s32.totalorder %s68, %s84
      %p86 = scmp.eq.s32.totalorder %s20, 0
      %p87 = por %p85, %p86
      %s88 = ssub.s32 %s22, %s29
      %p89 = scmp.eq.s32.totalorder %s88, 0
      %s91 = sadd.s32 %s90, 1
      %s92 = scalar_select %p89, %s90, %s91
      %p95 = pneg %p89
      %p96 = scmp.eq.s32.totalorder %s14, 1
      %p97 = por %p95, %p96
      %p98 = scmp.ne.s32.totalorder %s90, %s93
      %p99 = scmp.eq.s32.totalorder %s14, 0
      %p100 = por %p98, %p99
      %p101 = scmp.ne.s32.totalorder %s90, %s93
      %p102 = scmp.eq.s32.totalorder %s19, 1
      %p103 = por %p101, %p102
      %p104 = scmp.ne.s32.totalorder %s93, %s94
      %p105 = scmp.eq.s32.totalorder %s19, 0
      %p106 = por %p104, %p105
      %p107 = scmp.ne.s32.totalorder %s93, %s94
      %p108 = scmp.eq.s32.totalorder %s20, 1
      %p109 = por %p107, %p108
      %p111 = scmp.ne.s32.totalorder %s94, %s110
      %p112 = scmp.eq.s32.totalorder %s20, 0
      %p113 = por %p111, %p112
      %s115 = sadd.s32 %s114, 1
      %p118 = scmp.eq.s32.totalorder %s14, 1
      %p119 = scmp.ne.s32.totalorder %s114, %s116
      %p120 = scmp.eq.s32.totalorder %s14, 0
      %p121 = por %p119, %p120
      %p122 = scmp.ne.s32.totalorder %s114, %s116
      %p123 = scmp.eq.s32.totalorder %s19, 1
      %p124 = por %p122, %p123
      %p125 = scmp.ne.s32.totalorder %s116, %s117
      %p126 = scmp.eq.s32.totalorder %s19, 0
      %p127 = por %p125, %p126
      %p128 = scmp.ne.s32.totalorder %s116, %s117
      %p129 = scmp.eq.s32.totalorder %s20, 1
      %p130 = por %p128, %p129
      %p132 = scmp.ne.s32.totalorder %s117, %s131
      %p133 = scmp.eq.s32.totalorder %s20, 0
      %p134 = por %p132, %p133
      %s135 = ssub.s32 %s21, %s33
      %s136 = ssub.s32 %s22, %s29
      %s137 = sor.u32 %s135, %s136
      %p138 = scmp.eq.s32.totalorder %s137, 0
      %s140 = sadd.s32 %s139, 1
      %s141 = scalar_select %p138, %s139, %s140
      %p144 = pneg %p138
      %p145 = scmp.eq.s32.totalorder %s14, 1
      %p146 = por %p144, %p145
      %p147 = scmp.ne.s32.totalorder %s139, %s142
      %p148 = scmp.eq.s32.totalorder %s14, 0
      %p149 = por %p147, %p148
      %p150 = scmp.ne.s32.totalorder %s139, %s142
      %p151 = scmp.eq.s32.totalorder %s19, 1
      %p152 = por %p150, %p151
      %p153 = scmp.ne.s32.totalorder %s142, %s143
      %p154 = scmp.eq.s32.totalorder %s19, 0
      %p155 = por %p153, %p154
      %p156 = scmp.ne.s32.totalorder %s142, %s143
      %p157 = scmp.eq.s32.totalorder %s20, 1
      %p158 = por %p156, %p157
      %p160 = scmp.ne.s32.totalorder %s143, %s159
      %p161 = scmp.eq.s32.totalorder %s20, 0
      %p162 = por %p160, %p161
      %p163 = scmp.le.s32.totalorder 1, %s14
      %p164 = scmp.lt.s32.totalorder %s14, 3
      %p165 = pnand %p163, %p164
      %p166 = pneg %p165
      // Predicated region
      $region9: #{tpu_custom_call.1} parent=5 // pred_check
        _
      $region10: #{tpu_custom_call.1} parent=5 // pred_check_branch
        %168 = sbr.rel (%p165) target = $region12
      $region11: #{tpu_custom_call.1} parent=5 // pred_region
        %s169 = ssub.s32 %s14, 1
        // Predicated region
        $region13: #{tpu_custom_call.1} parent=11 // pred_check
          %p170 = pneg %p106
        $region14: #{tpu_custom_call.1} parent=11 // pred_check_branch
          %172 = sbr.rel (%p170) target = $region16
        $region15: #{tpu_custom_call.1} parent=11 // pred_region
          %s173 = smul.u32 16, %s24
          %s175 = ssub.s32 6144, 6144
          %176 = vsyncadd [#allocation5], %s175
          %s177 = smul.addr %s173, 128
          %s178 = scalar_lea.hbm %s2, %s177
          %s179 = sshll.u32 [#allocation4], 4
          %s180 = int_to_ptr.vmem [resolvable:$true] %s179
          %185 = dma.hbm_to_vmem [thread:$0]  %s178, 6144, %s180, [#allocation5], 128, 128, 8
        $region16: #{tpu_custom_call.1} parent=11 // pred_fallthru
          _
        // Predicated region
        $region17: #{tpu_custom_call.1} parent=11 // pred_check
          %p186 = pneg %p127
        $region18: #{tpu_custom_call.1} parent=11 // pred_check_branch
          %188 = sbr.rel (%p186) target = $region20
        $region19: #{tpu_custom_call.1} parent=11 // pred_region
          _
        $region20: #{tpu_custom_call.1} parent=11 // pred_fallthru
          _
      $region12: #{tpu_custom_call.1} parent=5 // pred_fallthru
        _
      %p189 = scmp.lt.s32.totalorder %s14, 2
      // Predicated region
      $region21: #{tpu_custom_call.1} parent=5 // pred_check
        %p190 = pneg %p189
      $region22: #{tpu_custom_call.1} parent=5 // pred_check_branch
        %192 = sbr.rel (%p190) target = $region24
      $region23: #{tpu_custom_call.1} parent=5 // pred_region
        // Predicated region
        $region25: #{tpu_custom_call.1} parent=23 // pred_check
          %p193 = pneg %p48
        $region26: #{tpu_custom_call.1} parent=23 // pred_check_branch
          %195 = sbr.rel (%p193) target = $region28
        $region27: #{tpu_custom_call.1} parent=23 // pred_region
          %s196 = sand.u32 %s38, 1
          %s197 = scalar_lea.sflag [#allocation3], %s196
          %s198 = sand.u32 %s38, 1
          %s199 = smul.addr %s198, 128
          %s200 = scalar_lea.vmem [#allocation2], %s199
          %s201 = smul.u32 16, %s22
          %s203 = ssub.s32 2048, 2048
          %204 = vsyncadd %s197, %s203
          %s205 = smul.addr %s21, 16
          %s206 = sadd.s32 %s201, %s205
          %s207 = smul.addr %s206, 128
          %s208 = scalar_lea.hbm %s0, %s207
          %s209 = sshll.u32 %s200, 4
          %s210 = int_to_ptr.vmem [resolvable:$true] %s209
          %215 = dma.hbm_to_vmem [thread:$0]  %s208, 2048, %s210, %s197, 128, 128, 8
        $region28: #{tpu_custom_call.1} parent=23 // pred_fallthru
          _
        // Predicated region
        $region29: #{tpu_custom_call.1} parent=23 // pred_check
          %p216 = pneg %p74
        $region30: #{tpu_custom_call.1} parent=23 // pred_check_branch
          %218 = sbr.rel (%p216) target = $region32
        $region31: #{tpu_custom_call.1} parent=23 // pred_region
          %p219 = scmp.lt.s32.totalorder %s21, 1
          %s220 = scalar_select %p219, %s21, 1
          %s221 = smul.addr %s220, 16
          %s222 = smul.addr %s221, 4
          %s223 = scalar_lea.vmem %s1, %s222
        $region32: #{tpu_custom_call.1} parent=23 // pred_fallthru
          _
      $region24: #{tpu_custom_call.1} parent=5 // pred_fallthru
        _
      %p224 = scmp.le.s32.totalorder 1, %s14
      %p225 = scmp.lt.s32.totalorder %s14, 3
      %p226 = pnand %p224, %p225
      %p227 = pneg %p226
      // Predicated region
      $region33: #{tpu_custom_call.1} parent=5 // pred_check
        _
      $region34: #{tpu_custom_call.1} parent=5 // pred_check_branch
        %229 = sbr.rel (%p226) target = $region36
      $region35: #{tpu_custom_call.1} parent=5 // pred_region
        %s230 = ssub.s32 %s14, 1
        %s231 = sand.u32 %s41, 1
        %s232 = scalar_lea.sflag [#allocation3], %s231
        %s233 = sand.u32 %s41, 1
        %s234 = smul.addr %s233, 128
        %s235 = scalar_lea.vmem [#allocation2], %s234
        // Predicated region
        $region37: #{tpu_custom_call.1} parent=35 // pred_check
          %p236 = pneg %p54
        $region38: #{tpu_custom_call.1} parent=35 // pred_check_branch
          %238 = sbr.rel (%p236) target = $region40
        $region39: #{tpu_custom_call.1} parent=35 // pred_region
          %239 = dma.done %s232, 2048
        $region40: #{tpu_custom_call.1} parent=35 // pred_fallthru
          _
        // Predicated region
        $region41: #{tpu_custom_call.1} parent=35 // pred_check
          %p240 = pneg %p106
        $region42: #{tpu_custom_call.1} parent=35 // pred_check_branch
          %242 = sbr.rel (%p240) target = $region44
        $region43: #{tpu_custom_call.1} parent=35 // pred_region
          %243 = dma.done [#allocation5], 6144
        $region44: #{tpu_custom_call.1} parent=35 // pred_fallthru
          _
        %s244 = sand.u32 %s41, 1
        %s245 = scalar_lea.sflag [#allocation3], %s244
        %s246 = sand.u32 %s41, 1
        %s247 = smul.addr %s246, 128
        %s248 = scalar_lea.vmem [#allocation2], %s247
        %p249 = pneg %p54
        %p250 = pneg %p51
        %p251 = scmp.lt.s32.totalorder %s23, 1
        %s252 = scalar_select %p251, %s23, 1
        %s253 = smul.addr %s252, 16
        %s254 = smul.addr %s253, 4
        %s255 = scalar_lea.vmem %s1, %s254
        %p256 = pneg %p80
        %p257 = pneg %p77
        %p258 = pneg %p106
        %p259 = pneg %p103
        %p260 = pneg %p127
        %p261 = pneg %p124
        %p262 = pneg %p155
        %p263 = pneg %p152
        %s264 = smul.u32 16, %s24
        %p265 = scmp.lt.s32.totalorder %s23, 1
        %s266 = scalar_select %p265, %s23, 1
        %p267 = scmp.lt.s32.totalorder %s264, 15
        %s268 = scalar_select %p267, %s264, 15
        %s269 = smul.addr %s266, 16
        %s270 = sadd.s32 %s268, %s269
        %s271 = smul.addr %s270, 8
        %s272 = scalar_lea.vmem %s4, %s271
        %s273 = smul.u32 16, %s24
        %p274 = scmp.lt.s32.totalorder %s23, 1
        %s275 = scalar_select %p274, %s23, 1
        %s276 = smul.addr %s275, 16
        %s277 = smul.addr %s276, 4
        %s278 = scalar_lea.vmem %s1, %s277
        %s279 = smul.u32 16, %s24
        %s280 = smul.u32 16, %s24
        %p281 = scmp.lt.s32.totalorder %s23, 1
        %s282 = scalar_select %p281, %s23, 1
        %p283 = scmp.lt.s32.totalorder %s280, 15
        %s284 = scalar_select %p283, %s280, 15
        %s285 = smul.addr %s282, 16
        %s286 = sadd.s32 %s284, %s285
        %s287 = smul.addr %s286, 8
        %s288 = scalar_lea.vmem %s4, %s287
        %s289 = smul.u32 16, %s24
        %v291 = vld [vmem:[%s235] sm:$0xff]
        %v292 = vld [vmem:[%s235 + $0x8] sm:$0xff]
        %v293 = vld [vmem:[%s235 + $0x10] sm:$0xff]
        %v294 = vld [vmem:[%s235 + $0x18] sm:$0xff]
        %v295 = vld [vmem:[%s235 + $0x20] sm:$0xff]
        %v296 = vld [vmem:[%s235 + $0x28] sm:$0xff]
        %v297 = vld [vmem:[%s235 + $0x30] sm:$0xff]
        %v298 = vld [vmem:[%s235 + $0x38] sm:$0xff]
        %v299 = vld [vmem:[%s235 + $0x40] sm:$0xff]
        %v300 = vld [vmem:[%s235 + $0x48] sm:$0xff]
        %v301 = vld [vmem:[%s235 + $0x50] sm:$0xff]
        %v302 = vld [vmem:[%s235 + $0x58] sm:$0xff]
        %v303 = vld [vmem:[%s235 + $0x60] sm:$0xff]
        %v304 = vld [vmem:[%s235 + $0x68] sm:$0xff]
        %v305 = vld [vmem:[%s235 + $0x70] sm:$0xff]
        %v306 = vld [vmem:[%s235 + $0x78] sm:$0xff]
        %v307 = vld [vmem:[%s278] sm:$0xf]
        %v308 = vld [vmem:[%s278 + $0x4] sm:$0xf]
        %v309 = vld [vmem:[%s278 + $0x8] sm:$0xf]
        %v310 = vld [vmem:[%s278 + $0xc] sm:$0xf]
        %v311 = vld [vmem:[%s278 + $0x10] sm:$0xf]
        %v312 = vld [vmem:[%s278 + $0x14] sm:$0xf]
        %v313 = vld [vmem:[%s278 + $0x18] sm:$0xf]
        %v314 = vld [vmem:[%s278 + $0x1c] sm:$0xf]
        %v315 = vld [vmem:[%s278 + $0x20] sm:$0xf]
        %v316 = vld [vmem:[%s278 + $0x24] sm:$0xf]
        %v317 = vld [vmem:[%s278 + $0x28] sm:$0xf]
        %v318 = vld [vmem:[%s278 + $0x2c] sm:$0xf]
        %v319 = vld [vmem:[%s278 + $0x30] sm:$0xf]
        %v320 = vld [vmem:[%s278 + $0x34] sm:$0xf]
        %v321 = vld [vmem:[%s278 + $0x38] sm:$0xf]
        %v322 = vld [vmem:[%s278 + $0x3c] sm:$0xf]
        %v323 = vld [vmem:[#allocation4] sm:$0xff]
        %v324 = vld [vmem:[#allocation4 + $0x8] sm:$0xff]
        %v325 = vld [vmem:[#allocation4 + $0x10] sm:$0xff]
        %v326 = vld [vmem:[#allocation4 + $0x18] sm:$0xff]
        %v327 = vld [vmem:[#allocation4 + $0x20] sm:$0xff]
        %v328 = vld [vmem:[#allocation4 + $0x28] sm:$0xff]
        %v329 = vld [vmem:[#allocation4 + $0x30] sm:$0xff]
        %v330 = vld [vmem:[#allocation4 + $0x38] sm:$0xff]
        %v331 = vld [vmem:[#allocation4 + $0x40] sm:$0xff]
        %v332 = vld [vmem:[#allocation4 + $0x48] sm:$0xff]
        %v333 = vld [vmem:[#allocation4 + $0x50] sm:$0xff]
        %v334 = vld [vmem:[#allocation4 + $0x58] sm:$0xff]
        %v335 = vld [vmem:[#allocation4 + $0x60] sm:$0xff]
        %v336 = vld [vmem:[#allocation4 + $0x68] sm:$0xff]
        %v337 = vld [vmem:[#allocation4 + $0x70] sm:$0xff]
        %v338 = vld [vmem:[#allocation4 + $0x78] sm:$0xff]
        %v339 = vmul.f32 %v323, %v291
        %v340 = vmul.f32 %v324, %v292
        %v341 = vmul.f32 %v325, %v293
        %v342 = vmul.f32 %v326, %v294
        %v343 = vmul.f32 %v327, %v295
        %v344 = vmul.f32 %v328, %v296
        %v345 = vmul.f32 %v329, %v297
        %v346 = vmul.f32 %v330, %v298
        %v347 = vmul.f32 %v331, %v299
        %v348 = vmul.f32 %v332, %v300
        %v349 = vmul.f32 %v333, %v301
        %v350 = vmul.f32 %v334, %v302
        %v351 = vmul.f32 %v335, %v303
        %v352 = vmul.f32 %v336, %v304
        %v353 = vmul.f32 %v337, %v305
        %v354 = vmul.f32 %v338, %v306
        %v355 = vpack.c.bf16 %v340, %v339
        %v356 = vpack.c.bf16 %v342, %v341
        %v357 = vpack.c.bf16 %v344, %v343
        %v358 = vpack.c.bf16 %v346, %v345
        %v359 = vpack.c.bf16 %v348, %v347
        %v360 = vpack.c.bf16 %v350, %v349
        %v361 = vpack.c.bf16 %v352, %v351
        %v362 = vpack.c.bf16 %v354, %v353
        %v379 = vunpack.c.l.b16 %v307
        %v380 = vunpack.c.l.b16 %v308
        %v381 = vunpack.c.l.b16 %v309
        %v382 = vunpack.c.l.b16 %v310
        %v383 = vunpack.c.l.b16 %v311
        %v384 = vunpack.c.l.b16 %v312
        %v385 = vunpack.c.l.b16 %v313
        %v386 = vunpack.c.l.b16 %v314
        %v387 = vunpack.c.l.b16 %v315
        %v388 = vunpack.c.l.b16 %v316
        %v389 = vunpack.c.l.b16 %v317
        %v390 = vunpack.c.l.b16 %v318
        %v391 = vunpack.c.l.b16 %v319
        %v392 = vunpack.c.l.b16 %v320
        %v393 = vunpack.c.l.b16 %v321
        %v394 = vunpack.c.l.b16 %v322
        %v395 = vpack.c.b16 %v380, %v379
        %v396 = vpack.c.b16 %v382, %v381
        %v397 = vpack.c.b16 %v384, %v383
        %v398 = vpack.c.b16 %v386, %v385
        %v399 = vpack.c.b16 %v388, %v387
        %v400 = vpack.c.b16 %v390, %v389
        %v401 = vpack.c.b16 %v392, %v391
        %v402 = vpack.c.b16 %v394, %v393
        %411 = vmatprep.subr.bf16.mxu0 0
        %412 = vmatpush1.bf16.msra.mxu0 %v395
        %413 = vmatprep.subr.bf16.mxu0 0
        %414 = vmatpush1.bf16.msra.mxu0 %v396
        %415 = vmatprep.subr.bf16.mxu0 0
        %416 = vmatpush1.bf16.msra.mxu0 %v397
        %417 = vmatprep.subr.bf16.mxu0 0
        %418 = vmatpush1.bf16.msra.mxu0 %v398
        %419 = vmatprep.subr.bf16.mxu0 0
        %420 = vmatpush1.bf16.msra.mxu0 %v399
        %421 = vmatprep.subr.bf16.mxu0 0
        %422 = vmatpush1.bf16.msra.mxu0 %v400
        %423 = vmatprep.subr.bf16.mxu0 0
        %424 = vmatpush1.bf16.msra.mxu0 %v401
        %425 = vmatprep.subr.bf16.mxu0 0
        %426 = vmatpush1.bf16.msra.mxu0 %v402
        %427 = vmatprep.subr.bf16.mxu0 0
        %428 = vmatpush1.bf16.msra.mxu0 0
        %429 = vmatprep.subr.bf16.mxu0 0
        %430 = vmatpush1.bf16.msra.mxu0 0
        %431 = vmatprep.subr.bf16.mxu0 0
        %432 = vmatpush1.bf16.msra.mxu0 0
        %433 = vmatprep.subr.bf16.mxu0 0
        %434 = vmatpush1.bf16.msra.mxu0 0
        %435 = vmatprep.subr.bf16.mxu0 0
        %436 = vmatpush1.bf16.msra.mxu0 0
        %437 = vmatprep.subr.bf16.mxu0 0
        %438 = vmatpush1.bf16.msra.mxu0 0
        %439 = vmatprep.subr.bf16.mxu0 0
        %440 = vmatpush1.bf16.msra.mxu0 0
        %441 = vmatprep.subr.bf16.mxu0 0
        %442 = vmatpush1.bf16.msra.mxu0 0
        %443 = vmatprep.mubr.bf16.mxu0 0
        %444 = vmatmul.mubr.bf16.gmra.mrb[0].mxu0 %v355
        %v445 = vpop.f32.mrb[0].mxu0
        %v446 = vadd.f32 0.0, %v445
        %v447 = vpop.f32.mrb[0].mxu0
        %v448 = vpop.f32.mrb[0].mxu0
        %v449 = vadd.f32 0.0, %v448
        %v450 = vpop.f32.mrb[0].mxu0
        %451 = vmatprep.mubr.bf16.mxu0 0
        %452 = vmatmul.mubr.bf16.gmra.mrb[0].mxu0 %v356
        %v453 = vpop.f32.mrb[0].mxu0
        %v454 = vadd.f32 0.0, %v453
        %v455 = vpop.f32.mrb[0].mxu0
        %v456 = vpop.f32.mrb[0].mxu0
        %v457 = vadd.f32 0.0, %v456
        %v458 = vpop.f32.mrb[0].mxu0
        %459 = vmatprep.mubr.bf16.mxu0 0
        %460 = vmatmul.mubr.bf16.gmra.mrb[0].mxu0 %v357
        %v461 = vpop.f32.mrb[0].mxu0
        %v462 = vadd.f32 0.0, %v461
        %v463 = vpop.f32.mrb[0].mxu0
        %v464 = vpop.f32.mrb[0].mxu0
        %v465 = vadd.f32 0.0, %v464
        %v466 = vpop.f32.mrb[0].mxu0
        %467 = vmatprep.mubr.bf16.mxu0 0
        %468 = vmatmul.mubr.bf16.gmra.mrb[0].mxu0 %v358
        %v469 = vpop.f32.mrb[0].mxu0
        %v470 = vadd.f32 0.0, %v469
        %v471 = vpop.f32.mrb[0].mxu0
        %v472 = vpop.f32.mrb[0].mxu0
        %v473 = vadd.f32 0.0, %v472
        %v474 = vpop.f32.mrb[0].mxu0
        %475 = vmatprep.mubr.bf16.mxu0 0
        %476 = vmatmul.mubr.bf16.gmra.mrb[0].mxu0 %v359
        %v477 = vpop.f32.mrb[0].mxu0
        %v478 = vadd.f32 0.0, %v477
        %v479 = vpop.f32.mrb[0].mxu0
        %v480 = vpop.f32.mrb[0].mxu0
        %v481 = vadd.f32 0.0, %v480
        %v482 = vpop.f32.mrb[0].mxu0
        %483 = vmatprep.mubr.bf16.mxu0 0
        %484 = vmatmul.mubr.bf16.gmra.mrb[0].mxu0 %v360
        %v485 = vpop.f32.mrb[0].mxu0
        %v486 = vadd.f32 0.0, %v485
        %v487 = vpop.f32.mrb[0].mxu0
        %v488 = vpop.f32.mrb[0].mxu0
        %v489 = vadd.f32 0.0, %v488
        %v490 = vpop.f32.mrb[0].mxu0
        %491 = vmatprep.mubr.bf16.mxu0 0
        %492 = vmatmul.mubr.bf16.gmra.mrb[0].mxu0 %v361
        %v493 = vpop.f32.mrb[0].mxu0
        %v494 = vadd.f32 0.0, %v493
        %v495 = vpop.f32.mrb[0].mxu0
        %v496 = vpop.f32.mrb[0].mxu0
        %v497 = vadd.f32 0.0, %v496
        %v498 = vpop.f32.mrb[0].mxu0
        %499 = vmatprep.mubr.bf16.mxu0 0
        %500 = vmatmul.mubr.bf16.gmra.mrb[0].mxu0 %v362
        %v501 = vpop.f32.mrb[0].mxu0
        %v502 = vadd.f32 0.0, %v501
        %v503 = vpop.f32.mrb[0].mxu0
        %v504 = vpop.f32.mrb[0].mxu0
        %v505 = vadd.f32 0.0, %v504
        %v506 = vpop.f32.mrb[0].mxu0
        %507 = vdwg.mxu0
        %v508 = vpack.c.bf16 %v449, %v446
        %v509 = vpack.c.bf16 %v457, %v454
        %v510 = vpack.c.bf16 %v465, %v462
        %v511 = vpack.c.bf16 %v473, %v470
        %v512 = vpack.c.bf16 %v481, %v478
        %v513 = vpack.c.bf16 %v489, %v486
        %v514 = vpack.c.bf16 %v497, %v494
        %v515 = vpack.c.bf16 %v505, %v502
        %v516 = vld [vmem:[%s3] sm:$0xf]
        %v517 = vld [vmem:[%s3 + $0x4] sm:$0xf]
        %v518 = vld [vmem:[%s3 + $0x8] sm:$0xf]
        %v519 = vld [vmem:[%s3 + $0xc] sm:$0xf]
        %s520 = scalar_lea.vmem [#allocation4], 128
        %v521 = vld [vmem:[%s520] sm:$0xff]
        %v522 = vld [vmem:[%s520 + $0x8] sm:$0xff]
        %v523 = vld [vmem:[%s520 + $0x10] sm:$0xff]
        %v524 = vld [vmem:[%s520 + $0x18] sm:$0xff]
        %v525 = vld [vmem:[%s520 + $0x20] sm:$0xff]
        %v526 = vld [vmem:[%s520 + $0x28] sm:$0xff]
        %v527 = vld [vmem:[%s520 + $0x30] sm:$0xff]
        %v528 = vld [vmem:[%s520 + $0x38] sm:$0xff]
        %v529 = vld [vmem:[%s520 + $0x40] sm:$0xff]
        %v530 = vld [vmem:[%s520 + $0x48] sm:$0xff]
        %v531 = vld [vmem:[%s520 + $0x50] sm:$0xff]
        %v532 = vld [vmem:[%s520 + $0x58] sm:$0xff]
        %v533 = vld [vmem:[%s520 + $0x60] sm:$0xff]
        %v534 = vld [vmem:[%s520 + $0x68] sm:$0xff]
        %v535 = vld [vmem:[%s520 + $0x70] sm:$0xff]
        %v536 = vld [vmem:[%s520 + $0x78] sm:$0xff]
        %v537 = vmul.f32 %v521, %v291
        %v538 = vmul.f32 %v522, %v292
        %v539 = vmul.f32 %v523, %v293
        %v540 = vmul.f32 %v524, %v294
        %v541 = vmul.f32 %v525, %v295
        %v542 = vmul.f32 %v526, %v296
        %v543 = vmul.f32 %v527, %v297
        %v544 = vmul.f32 %v528, %v298
        %v545 = vmul.f32 %v529, %v299
        %v546 = vmul.f32 %v530, %v300
        %v547 = vmul.f32 %v531, %v301
        %v548 = vmul.f32 %v532, %v302
        %v549 = vmul.f32 %v533, %v303
        %v550 = vmul.f32 %v534, %v304
        %v551 = vmul.f32 %v535, %v305
        %v552 = vmul.f32 %v536, %v306
        %v553 = vpack.c.bf16 %v538, %v537
        %v554 = vpack.c.bf16 %v540, %v539
        %v555 = vpack.c.bf16 %v542, %v541
        %v556 = vpack.c.bf16 %v544, %v543
        %v557 = vpack.c.bf16 %v546, %v545
        %v558 = vpack.c.bf16 %v548, %v547
        %v559 = vpack.c.bf16 %v550, %v549
        %v560 = vpack.c.bf16 %v552, %v551
        %561 = vmatprep.subr.bf16.mxu0 0
        %562 = vmatpush1.bf16.msra.mxu0 %v395
        %563 = vmatprep.subr.bf16.mxu0 0
        %564 = vmatpush1.bf16.msra.mxu0 %v396
        %565 = vmatprep.subr.bf16.mxu0 0
        %566 = vmatpush1.bf16.msra.mxu0 %v397
        %567 = vmatprep.subr.bf16.mxu0 0
        %568 = vmatpush1.bf16.msra.mxu0 %v398
        %569 = vmatprep.subr.bf16.mxu0 0
        %570 = vmatpush1.bf16.msra.mxu0 %v399
        %571 = vmatprep.subr.bf16.mxu0 0
        %572 = vmatpush1.bf16.msra.mxu0 %v400
        %573 = vmatprep.subr.bf16.mxu0 0
        %574 = vmatpush1.bf16.msra.mxu0 %v401
        %575 = vmatprep.subr.bf16.mxu0 0
        %576 = vmatpush1.bf16.msra.mxu0 %v402
        %577 = vmatprep.subr.bf16.mxu0 0
        %578 = vmatpush1.bf16.msra.mxu0 0
        %579 = vmatprep.subr.bf16.mxu0 0
        %580 = vmatpush1.bf16.msra.mxu0 0
        %581 = vmatprep.subr.bf16.mxu0 0
        %582 = vmatpush1.bf16.msra.mxu0 0
        %583 = vmatprep.subr.bf16.mxu0 0
        %584 = vmatpush1.bf16.msra.mxu0 0
        %585 = vmatprep.subr.bf16.mxu0 0
        %586 = vmatpush1.bf16.msra.mxu0 0
        %587 = vmatprep.subr.bf16.mxu0 0
        %588 = vmatpush1.bf16.msra.mxu0 0
        %589 = vmatprep.subr.bf16.mxu0 0
        %590 = vmatpush1.bf16.msra.mxu0 0
        %591 = vmatprep.subr.bf16.mxu0 0
        %592 = vmatpush1.bf16.msra.mxu0 0
        %593 = vmatprep.mubr.bf16.mxu0 0
        %594 = vmatmul.mubr.bf16.gmra.mrb[0].mxu0 %v553
        %v595 = vpop.f32.mrb[0].mxu0
        %v596 = vadd.f32 0.0, %v595
        %v597 = vpop.f32.mrb[0].mxu0
        %v598 = vpop.f32.mrb[0].mxu0
        %v599 = vadd.f32 0.0, %v598
        %v600 = vpop.f32.mrb[0].mxu0
        %601 = vmatprep.mubr.bf16.mxu0 0
        %602 = vmatmul.mubr.bf16.gmra.mrb[0].mxu0 %v554
        %v603 = vpop.f32.mrb[0].mxu0
        %v604 = vadd.f32 0.0, %v603
        %v605 = vpop.f32.mrb[0].mxu0
        %v606 = vpop.f32.mrb[0].mxu0
        %v607 = vadd.f32 0.0, %v606
        %v608 = vpop.f32.mrb[0].mxu0
        %609 = vmatprep.mubr.bf16.mxu0 0
        %610 = vmatmul.mubr.bf16.gmra.mrb[0].mxu0 %v555
        %v611 = vpop.f32.mrb[0].mxu0
        %v612 = vadd.f32 0.0, %v611
        %v613 = vpop.f32.mrb[0].mxu0
        %v614 = vpop.f32.mrb[0].mxu0
        %v615 = vadd.f32 0.0, %v614
        %v616 = vpop.f32.mrb[0].mxu0
        %617 = vmatprep.mubr.bf16.mxu0 0
        %618 = vmatmul.mubr.bf16.gmra.mrb[0].mxu0 %v556
        %v619 = vpop.f32.mrb[0].mxu0
        %v620 = vadd.f32 0.0, %v619
        %v621 = vpop.f32.mrb[0].mxu0
        %v622 = vpop.f32.mrb[0].mxu0
        %v623 = vadd.f32 0.0, %v622
        %v624 = vpop.f32.mrb[0].mxu0
        %625 = vmatprep.mubr.bf16.mxu0 0
        %626 = vmatmul.mubr.bf16.gmra.mrb[0].mxu0 %v557
        %v627 = vpop.f32.mrb[0].mxu0
        %v628 = vadd.f32 0.0, %v627
        %v629 = vpop.f32.mrb[0].mxu0
        %v630 = vpop.f32.mrb[0].mxu0
        %v631 = vadd.f32 0.0, %v630
        %v632 = vpop.f32.mrb[0].mxu0
        %633 = vmatprep.mubr.bf16.mxu0 0
        %634 = vmatmul.mubr.bf16.gmra.mrb[0].mxu0 %v558
        %v635 = vpop.f32.mrb[0].mxu0
        %v636 = vadd.f32 0.0, %v635
        %v637 = vpop.f32.mrb[0].mxu0
        %v638 = vpop.f32.mrb[0].mxu0
        %v639 = vadd.f32 0.0, %v638
        %v640 = vpop.f32.mrb[0].mxu0
        %641 = vmatprep.mubr.bf16.mxu0 0
        %642 = vmatmul.mubr.bf16.gmra.mrb[0].mxu0 %v559
        %v643 = vpop.f32.mrb[0].mxu0
        %v644 = vadd.f32 0.0, %v643
        %v645 = vpop.f32.mrb[0].mxu0
        %v646 = vpop.f32.mrb[0].mxu0
        %v647 = vadd.f32 0.0, %v646
        %v648 = vpop.f32.mrb[0].mxu0
        %649 = vmatprep.mubr.bf16.mxu0 0
        %650 = vmatmul.mubr.bf16.gmra.mrb[0].mxu0 %v560
        %v651 = vpop.f32.mrb[0].mxu0
        %v652 = vadd.f32 0.0, %v651
        %v653 = vpop.f32.mrb[0].mxu0
        %v654 = vpop.f32.mrb[0].mxu0
        %v655 = vadd.f32 0.0, %v654
        %v656 = vpop.f32.mrb[0].mxu0
        %657 = vdwg.mxu0
        %v658 = vpack.c.bf16 %v599, %v596
        %v659 = vpack.c.bf16 %v607, %v604
        %v660 = vpack.c.bf16 %v615, %v612
        %v661 = vpack.c.bf16 %v623, %v620
        %v662 = vpack.c.bf16 %v631, %v628
        %v663 = vpack.c.bf16 %v639, %v636
        %v664 = vpack.c.bf16 %v647, %v644
        %v665 = vpack.c.bf16 %v655, %v652
        %s666 = scalar_lea.vmem %s3, 16
        %v667 = vld [vmem:[%s666] sm:$0xf]
        %v668 = vld [vmem:[%s666 + $0x4] sm:$0xf]
        %v669 = vld [vmem:[%s666 + $0x8] sm:$0xf]
        %v670 = vld [vmem:[%s666 + $0xc] sm:$0xf]
        %v675 = vunpack.c.l.b16 %v667
        %v676 = vunpack.c.l.b16 %v668
        %v677 = vunpack.c.l.b16 %v669
        %v678 = vunpack.c.l.b16 %v670
        %v679 = vpack.c.b16 %v676, %v675
        %v680 = vpack.c.b16 %v678, %v677
        %vm683 = vcmask 261120
        %v685 = vsel %vm683, %v658, 0
        %v688 = vsel %vm683, %v659, 0
        %v691 = vsel %vm683, %v660, 0
        %v694 = vsel %vm683, %v661, 0
        %v697 = vsel %vm683, %v662, 0
        %v700 = vsel %vm683, %v663, 0
        %v703 = vsel %vm683, %v664, 0
        %v706 = vsel %vm683, %v665, 0
        %708 = vmatprep.subr.bf16.mxu0 0
        %709 = vmatpush1.bf16.msra.mxu0 %v679
        %710 = vmatprep.subr.bf16.mxu0 0
        %711 = vmatpush1.bf16.msra.mxu0 %v680
        %712 = vmatprep.subr.bf16.mxu0 0
        %713 = vmatpush1.bf16.msra.mxu0 0
        %714 = vmatprep.subr.bf16.mxu0 0
        %715 = vmatpush1.bf16.msra.mxu0 0
        %716 = vmatprep.subr.bf16.mxu0 0
        %717 = vmatpush1.bf16.msra.mxu0 0
        %718 = vmatprep.subr.bf16.mxu0 0
        %719 = vmatpush1.bf16.msra.mxu0 0
        %720 = vmatprep.subr.bf16.mxu0 0
        %721 = vmatpush1.bf16.msra.mxu0 0
        %722 = vmatprep.subr.bf16.mxu0 0
        %723 = vmatpush1.bf16.msra.mxu0 0
        %724 = vmatprep.subr.bf16.mxu0 0
        %725 = vmatpush1.bf16.msra.mxu0 0
        %726 = vmatprep.subr.bf16.mxu0 0
        %727 = vmatpush1.bf16.msra.mxu0 0
        %728 = vmatprep.subr.bf16.mxu0 0
        %729 = vmatpush1.bf16.msra.mxu0 0
        %730 = vmatprep.subr.bf16.mxu0 0
        %731 = vmatpush1.bf16.msra.mxu0 0
        %732 = vmatprep.subr.bf16.mxu0 0
        %733 = vmatpush1.bf16.msra.mxu0 0
        %734 = vmatprep.subr.bf16.mxu0 0
        %735 = vmatpush1.bf16.msra.mxu0 0
        %736 = vmatprep.subr.bf16.mxu0 0
        %737 = vmatpush1.bf16.msra.mxu0 0
        %738 = vmatprep.subr.bf16.mxu0 0
        %739 = vmatpush1.bf16.msra.mxu0 0
        %740 = vmatprep.mubr.bf16.mxu0 0
        %741 = vmatmul.mubr.bf16.gmra.mrb[0].mxu0 %v685
        %v742 = vpop.f32.mrb[0].mxu0
        %v743 = vadd.f32 0.0, %v742
        %v744 = vpop.f32.mrb[0].mxu0
        %v745 = vpop.f32.mrb[0].mxu0
        %v746 = vadd.f32 0.0, %v745
        %v747 = vpop.f32.mrb[0].mxu0
        %748 = vmatprep.mubr.bf16.mxu0 0
        %749 = vmatmul.mubr.bf16.gmra.mrb[0].mxu0 %v688
        %v750 = vpop.f32.mrb[0].mxu0
        %v751 = vadd.f32 0.0, %v750
        %v752 = vpop.f32.mrb[0].mxu0
        %v753 = vpop.f32.mrb[0].mxu0
        %v754 = vadd.f32 0.0, %v753
        %v755 = vpop.f32.mrb[0].mxu0
        %756 = vmatprep.mubr.bf16.mxu0 0
        %757 = vmatmul.mubr.bf16.gmra.mrb[0].mxu0 %v691
        %v758 = vpop.f32.mrb[0].mxu0
        %v759 = vadd.f32 0.0, %v758
        %v760 = vpop.f32.mrb[0].mxu0
        %v761 = vpop.f32.mrb[0].mxu0
        %v762 = vadd.f32 0.0, %v761
        %v763 = vpop.f32.mrb[0].mxu0
        %764 = vmatprep.mubr.bf16.mxu0 0
        %765 = vmatmul.mubr.bf16.gmra.mrb[0].mxu0 %v694
        %v766 = vpop.f32.mrb[0].mxu0
        %v767 = vadd.f32 0.0, %v766
        %v768 = vpop.f32.mrb[0].mxu0
        %v769 = vpop.f32.mrb[0].mxu0
        %v770 = vadd.f32 0.0, %v769
        %v771 = vpop.f32.mrb[0].mxu0
        %772 = vmatprep.mubr.bf16.mxu0 0
        %773 = vmatmul.mubr.bf16.gmra.mrb[0].mxu0 %v697
        %v774 = vpop.f32.mrb[0].mxu0
        %v775 = vadd.f32 0.0, %v774
        %v776 = vpop.f32.mrb[0].mxu0
        %v777 = vpop.f32.mrb[0].mxu0
        %v778 = vadd.f32 0.0, %v777
        %v779 = vpop.f32.mrb[0].mxu0
        %780 = vmatprep.mubr.bf16.mxu0 0
        %781 = vmatmul.mubr.bf16.gmra.mrb[0].mxu0 %v700
        %v782 = vpop.f32.mrb[0].mxu0
        %v783 = vadd.f32 0.0, %v782
        %v784 = vpop.f32.mrb[0].mxu0
        %v785 = vpop.f32.mrb[0].mxu0
        %v786 = vadd.f32 0.0, %v785
        %v787 = vpop.f32.mrb[0].mxu0
        %788 = vmatprep.mubr.bf16.mxu0 0
        %789 = vmatmul.mubr.bf16.gmra.mrb[0].mxu0 %v703
        %v790 = vpop.f32.mrb[0].mxu0
        %v791 = vadd.f32 0.0, %v790
        %v792 = vpop.f32.mrb[0].mxu0
        %v793 = vpop.f32.mrb[0].mxu0
        %v794 = vadd.f32 0.0, %v793
        %v795 = vpop.f32.mrb[0].mxu0
        %796 = vmatprep.mubr.bf16.mxu0 0
        %797 = vmatmul.mubr.bf16.gmra.mrb[0].mxu0 %v706
        %v798 = vpop.f32.mrb[0].mxu0
        %v799 = vadd.f32 0.0, %v798
        %v800 = vpop.f32.mrb[0].mxu0
        %v801 = vpop.f32.mrb[0].mxu0
        %v802 = vadd.f32 0.0, %v801
        %v803 = vpop.f32.mrb[0].mxu0
        %804 = vdwg.mxu0
        %v809 = vunpack.c.l.b16 %v516
        %v810 = vunpack.c.l.b16 %v517
        %v811 = vunpack.c.l.b16 %v518
        %v812 = vunpack.c.l.b16 %v519
        %v813 = vpack.c.b16 %v810, %v809
        %v814 = vpack.c.b16 %v812, %v811
        %v818 = vsel %vm683, %v508, 0
        %v821 = vsel %vm683, %v509, 0
        %v824 = vsel %vm683, %v510, 0
        %v827 = vsel %vm683, %v511, 0
        %v830 = vsel %vm683, %v512, 0
        %v833 = vsel %vm683, %v513, 0
        %v836 = vsel %vm683, %v514, 0
        %v839 = vsel %vm683, %v515, 0
        %841 = vmatprep.subr.bf16.mxu0 0
        %842 = vmatpush1.bf16.msra.mxu0 %v813
        %843 = vmatprep.subr.bf16.mxu0 0
        %844 = vmatpush1.bf16.msra.mxu0 %v814
        %845 = vmatprep.subr.bf16.mxu0 0
        %846 = vmatpush1.bf16.msra.mxu0 0
        %847 = vmatprep.subr.bf16.mxu0 0
        %848 = vmatpush1.bf16.msra.mxu0 0
        %849 = vmatprep.subr.bf16.mxu0 0
        %850 = vmatpush1.bf16.msra.mxu0 0
        %851 = vmatprep.subr.bf16.mxu0 0
        %852 = vmatpush1.bf16.msra.mxu0 0
        %853 = vmatprep.subr.bf16.mxu0 0
        %854 = vmatpush1.bf16.msra.mxu0 0
        %855 = vmatprep.subr.bf16.mxu0 0
        %856 = vmatpush1.bf16.msra.mxu0 0
        %857 = vmatprep.subr.bf16.mxu0 0
        %858 = vmatpush1.bf16.msra.mxu0 0
        %859 = vmatprep.subr.bf16.mxu0 0
        %860 = vmatpush1.bf16.msra.mxu0 0
        %861 = vmatprep.subr.bf16.mxu0 0
        %862 = vmatpush1.bf16.msra.mxu0 0
        %863 = vmatprep.subr.bf16.mxu0 0
        %864 = vmatpush1.bf16.msra.mxu0 0
        %865 = vmatprep.subr.bf16.mxu0 0
        %866 = vmatpush1.bf16.msra.mxu0 0
        %867 = vmatprep.subr.bf16.mxu0 0
        %868 = vmatpush1.bf16.msra.mxu0 0
        %869 = vmatprep.subr.bf16.mxu0 0
        %870 = vmatpush1.bf16.msra.mxu0 0
        %871 = vmatprep.subr.bf16.mxu0 0
        %872 = vmatpush1.bf16.msra.mxu0 0
        %873 = vmatprep.mubr.bf16.mxu0 0
        %874 = vmatmul.mubr.bf16.gmra.mrb[0].mxu0 %v818
        %v875 = vpop.f32.mrb[0].mxu0
        %v876 = vadd.f32 %v743, %v875
        %v877 = vpop.f32.mrb[0].mxu0
        %v878 = vpop.f32.mrb[0].mxu0
        %v879 = vadd.f32 %v746, %v878
        %v880 = vpop.f32.mrb[0].mxu0
        %881 = vmatprep.mubr.bf16.mxu0 0
        %882 = vmatmul.mubr.bf16.gmra.mrb[0].mxu0 %v821
        %v883 = vpop.f32.mrb[0].mxu0
        %v884 = vadd.f32 %v751, %v883
        %v885 = vpop.f32.mrb[0].mxu0
        %v886 = vpop.f32.mrb[0].mxu0
        %v887 = vadd.f32 %v754, %v886
        %v888 = vpop.f32.mrb[0].mxu0
        %889 = vmatprep.mubr.bf16.mxu0 0
        %890 = vmatmul.mubr.bf16.gmra.mrb[0].mxu0 %v824
        %v891 = vpop.f32.mrb[0].mxu0
        %v892 = vadd.f32 %v759, %v891
        %v893 = vpop.f32.mrb[0].mxu0
        %v894 = vpop.f32.mrb[0].mxu0
        %v895 = vadd.f32 %v762, %v894
        %v896 = vpop.f32.mrb[0].mxu0
        %897 = vmatprep.mubr.bf16.mxu0 0
        %898 = vmatmul.mubr.bf16.gmra.mrb[0].mxu0 %v827
        %v899 = vpop.f32.mrb[0].mxu0
        %v900 = vadd.f32 %v767, %v899
        %v901 = vpop.f32.mrb[0].mxu0
        %v902 = vpop.f32.mrb[0].mxu0
        %v903 = vadd.f32 %v770, %v902
        %v904 = vpop.f32.mrb[0].mxu0
        %905 = vmatprep.mubr.bf16.mxu0 0
        %906 = vmatmul.mubr.bf16.gmra.mrb[0].mxu0 %v830
        %v907 = vpop.f32.mrb[0].mxu0
        %v908 = vadd.f32 %v775, %v907
        %v909 = vpop.f32.mrb[0].mxu0
        %v910 = vpop.f32.mrb[0].mxu0
        %v911 = vadd.f32 %v778, %v910
        %v912 = vpop.f32.mrb[0].mxu0
        %913 = vmatprep.mubr.bf16.mxu0 0
        %914 = vmatmul.mubr.bf16.gmra.mrb[0].mxu0 %v833
        %v915 = vpop.f32.mrb[0].mxu0
        %v916 = vadd.f32 %v783, %v915
        %v917 = vpop.f32.mrb[0].mxu0
        %v918 = vpop.f32.mrb[0].mxu0
        %v919 = vadd.f32 %v786, %v918
        %v920 = vpop.f32.mrb[0].mxu0
        %921 = vmatprep.mubr.bf16.mxu0 0
        %922 = vmatmul.mubr.bf16.gmra.mrb[0].mxu0 %v836
        %v923 = vpop.f32.mrb[0].mxu0
        %v924 = vadd.f32 %v791, %v923
        %v925 = vpop.f32.mrb[0].mxu0
        %v926 = vpop.f32.mrb[0].mxu0
        %v927 = vadd.f32 %v794, %v926
        %v928 = vpop.f32.mrb[0].mxu0
        %929 = vmatprep.mubr.bf16.mxu0 0
        %930 = vmatmul.mubr.bf16.gmra.mrb[0].mxu0 %v839
        %v931 = vpop.f32.mrb[0].mxu0
        %v932 = vadd.f32 %v799, %v931
        %v933 = vpop.f32.mrb[0].mxu0
        %v934 = vpop.f32.mrb[0].mxu0
        %v935 = vadd.f32 %v802, %v934
        %v936 = vpop.f32.mrb[0].mxu0
        %937 = vdwg.mxu0
        %s938 = scalar_lea.vmem [#allocation4], 256
        %v939 = vld [vmem:[%s938] sm:$0xff]
        %v940 = vld [vmem:[%s938 + $0x8] sm:$0xff]
        %v941 = vld [vmem:[%s938 + $0x10] sm:$0xff]
        %v942 = vld [vmem:[%s938 + $0x18] sm:$0xff]
        %v943 = vld [vmem:[%s938 + $0x20] sm:$0xff]
        %v944 = vld [vmem:[%s938 + $0x28] sm:$0xff]
        %v945 = vld [vmem:[%s938 + $0x30] sm:$0xff]
        %v946 = vld [vmem:[%s938 + $0x38] sm:$0xff]
        %v947 = vld [vmem:[%s938 + $0x40] sm:$0xff]
        %v948 = vld [vmem:[%s938 + $0x48] sm:$0xff]
        %v949 = vld [vmem:[%s938 + $0x50] sm:$0xff]
        %v950 = vld [vmem:[%s938 + $0x58] sm:$0xff]
        %v951 = vld [vmem:[%s938 + $0x60] sm:$0xff]
        %v952 = vld [vmem:[%s938 + $0x68] sm:$0xff]
        %v953 = vld [vmem:[%s938 + $0x70] sm:$0xff]
        %v954 = vld [vmem:[%s938 + $0x78] sm:$0xff]
        %v955 = vmul.f32 %v939, %v291
        %v956 = vmul.f32 %v940, %v292
        %v957 = vmul.f32 %v941, %v293
        %v958 = vmul.f32 %v942, %v294
        %v959 = vmul.f32 %v943, %v295
        %v960 = vmul.f32 %v944, %v296
        %v961 = vmul.f32 %v945, %v297
        %v962 = vmul.f32 %v946, %v298
        %v963 = vmul.f32 %v947, %v299
        %v964 = vmul.f32 %v948, %v300
        %v965 = vmul.f32 %v949, %v301
        %v966 = vmul.f32 %v950, %v302
        %v967 = vmul.f32 %v951, %v303
        %v968 = vmul.f32 %v952, %v304
        %v969 = vmul.f32 %v953, %v305
        %v970 = vmul.f32 %v954, %v306
        %v971 = vpack.c.bf16 %v956, %v955
        %v972 = vpack.c.bf16 %v958, %v957
        %v973 = vpack.c.bf16 %v960, %v959
        %v974 = vpack.c.bf16 %v962, %v961
        %v975 = vpack.c.bf16 %v964, %v963
        %v976 = vpack.c.bf16 %v966, %v965
        %v977 = vpack.c.bf16 %v968, %v967
        %v978 = vpack.c.bf16 %v970, %v969
        %979 = vmatprep.subr.bf16.mxu0 0
        %980 = vmatpush1.bf16.msra.mxu0 %v395
        %981 = vmatprep.subr.bf16.mxu0 0
        %982 = vmatpush1.bf16.msra.mxu0 %v396
        %983 = vmatprep.subr.bf16.mxu0 0
        %984 = vmatpush1.bf16.msra.mxu0 %v397
        %985 = vmatprep.subr.bf16.mxu0 0
        %986 = vmatpush1.bf16.msra.mxu0 %v398
        %987 = vmatprep.subr.bf16.mxu0 0
        %988 = vmatpush1.bf16.msra.mxu0 %v399
        %989 = vmatprep.subr.bf16.mxu0 0
        %990 = vmatpush1.bf16.msra.mxu0 %v400
        %991 = vmatprep.subr.bf16.mxu0 0
        %992 = vmatpush1.bf16.msra.mxu0 %v401
        %993 = vmatprep.subr.bf16.mxu0 0
        %994 = vmatpush1.bf16.msra.mxu0 %v402
        %995 = vmatprep.subr.bf16.mxu0 0
        %996 = vmatpush1.bf16.msra.mxu0 0
        %997 = vmatprep.subr.bf16.mxu0 0
        %998 = vmatpush1.bf16.msra.mxu0 0
        %999 = vmatprep.subr.bf16.mxu0 0
        %1000 = vmatpush1.bf16.msra.mxu0 0
        %1001 = vmatprep.subr.bf16.mxu0 0
        %1002 = vmatpush1.bf16.msra.mxu0 0
        %1003 = vmatprep.subr.bf16.mxu0 0
        %1004 = vmatpush1.bf16.msra.mxu0 0
        %1005 = vmatprep.subr.bf16.mxu0 0
        %1006 = vmatpush1.bf16.msra.mxu0 0
        %1007 = vmatprep.subr.bf16.mxu0 0
        %1008 = vmatpush1.bf16.msra.mxu0 0
        %1009 = vmatprep.subr.bf16.mxu0 0
        %1010 = vmatpush1.bf16.msra.mxu0 0
        %1011 = vmatprep.mubr.bf16.mxu0 0
        %1012 = vmatmul.mubr.bf16.gmra.mrb[0].mxu0 %v971
        %v1013 = vpop.f32.mrb[0].mxu0
        %v1014 = vadd.f32 0.0, %v1013
        %v1015 = vpop.f32.mrb[0].mxu0
        %v1016 = vpop.f32.mrb[0].mxu0
        %v1017 = vadd.f32 0.0, %v1016
        %v1018 = vpop.f32.mrb[0].mxu0
        %1019 = vmatprep.mubr.bf16.mxu0 0
        %1020 = vmatmul.mubr.bf16.gmra.mrb[0].mxu0 %v972
        %v1021 = vpop.f32.mrb[0].mxu0
        %v1022 = vadd.f32 0.0, %v1021
        %v1023 = vpop.f32.mrb[0].mxu0
        %v1024 = vpop.f32.mrb[0].mxu0
        %v1025 = vadd.f32 0.0, %v1024
        %v1026 = vpop.f32.mrb[0].mxu0
        %1027 = vmatprep.mubr.bf16.mxu0 0
        %1028 = vmatmul.mubr.bf16.gmra.mrb[0].mxu0 %v973
        %v1029 = vpop.f32.mrb[0].mxu0
        %v1030 = vadd.f32 0.0, %v1029
        %v1031 = vpop.f32.mrb[0].mxu0
        %v1032 = vpop.f32.mrb[0].mxu0
        %v1033 = vadd.f32 0.0, %v1032
        %v1034 = vpop.f32.mrb[0].mxu0
        %1035 = vmatprep.mubr.bf16.mxu0 0
        %1036 = vmatmul.mubr.bf16.gmra.mrb[0].mxu0 %v974
        %v1037 = vpop.f32.mrb[0].mxu0
        %v1038 = vadd.f32 0.0, %v1037
        %v1039 = vpop.f32.mrb[0].mxu0
        %v1040 = vpop.f32.mrb[0].mxu0
        %v1041 = vadd.f32 0.0, %v1040
        %v1042 = vpop.f32.mrb[0].mxu0
        %1043 = vmatprep.mubr.bf16.mxu0 0
        %1044 = vmatmul.mubr.bf16.gmra.mrb[0].mxu0 %v975
        %v1045 = vpop.f32.mrb[0].mxu0
        %v1046 = vadd.f32 0.0, %v1045
        %v1047 = vpop.f32.mrb[0].mxu0
        %v1048 = vpop.f32.mrb[0].mxu0
        %v1049 = vadd.f32 0.0, %v1048
        %v1050 = vpop.f32.mrb[0].mxu0
        %1051 = vmatprep.mubr.bf16.mxu0 0
        %1052 = vmatmul.mubr.bf16.gmra.mrb[0].mxu0 %v976
        %v1053 = vpop.f32.mrb[0].mxu0
        %v1054 = vadd.f32 0.0, %v1053
        %v1055 = vpop.f32.mrb[0].mxu0
        %v1056 = vpop.f32.mrb[0].mxu0
        %v1057 = vadd.f32 0.0, %v1056
        %v1058 = vpop.f32.mrb[0].mxu0
        %1059 = vmatprep.mubr.bf16.mxu0 0
        %1060 = vmatmul.mubr.bf16.gmra.mrb[0].mxu0 %v977
        %v1061 = vpop.f32.mrb[0].mxu0
        %v1062 = vadd.f32 0.0, %v1061
        %v1063 = vpop.f32.mrb[0].mxu0
        %v1064 = vpop.f32.mrb[0].mxu0
        %v1065 = vadd.f32 0.0, %v1064
        %v1066 = vpop.f32.mrb[0].mxu0
        %1067 = vmatprep.mubr.bf16.mxu0 0
        %1068 = vmatmul.mubr.bf16.gmra.mrb[0].mxu0 %v978
        %v1069 = vpop.f32.mrb[0].mxu0
        %v1070 = vadd.f32 0.0, %v1069
        %v1071 = vpop.f32.mrb[0].mxu0
        %v1072 = vpop.f32.mrb[0].mxu0
        %v1073 = vadd.f32 0.0, %v1072
        %v1074 = vpop.f32.mrb[0].mxu0
        %1075 = vdwg.mxu0
        %v1076 = vpack.c.bf16 %v1017, %v1014
        %v1077 = vpack.c.bf16 %v1025, %v1022
        %v1078 = vpack.c.bf16 %v1033, %v1030
        %v1079 = vpack.c.bf16 %v1041, %v1038
        %v1080 = vpack.c.bf16 %v1049, %v1046
        %v1081 = vpack.c.bf16 %v1057, %v1054
        %v1082 = vpack.c.bf16 %v1065, %v1062
        %v1083 = vpack.c.bf16 %v1073, %v1070
        %s1084 = scalar_lea.vmem %s3, 32
        %v1085 = vld [vmem:[%s1084] sm:$0xf]
        %v1086 = vld [vmem:[%s1084 + $0x4] sm:$0xf]
        %v1087 = vld [vmem:[%s1084 + $0x8] sm:$0xf]
        %v1088 = vld [vmem:[%s1084 + $0xc] sm:$0xf]
        %v1093 = vunpack.c.l.b16 %v1085
        %v1094 = vunpack.c.l.b16 %v1086
        %v1095 = vunpack.c.l.b16 %v1087
        %v1096 = vunpack.c.l.b16 %v1088
        %v1097 = vpack.c.b16 %v1094, %v1093
        %v1098 = vpack.c.b16 %v1096, %v1095
        %v1102 = vsel %vm683, %v1076, 0
        %v1105 = vsel %vm683, %v1077, 0
        %v1108 = vsel %vm683, %v1078, 0
        %v1111 = vsel %vm683, %v1079, 0
        %v1114 = vsel %vm683, %v1080, 0
        %v1117 = vsel %vm683, %v1081, 0
        %v1120 = vsel %vm683, %v1082, 0
        %v1123 = vsel %vm683, %v1083, 0
        %1125 = vmatprep.subr.bf16.mxu0 0
        %1126 = vmatpush1.bf16.msra.mxu0 %v1097
        %1127 = vmatprep.subr.bf16.mxu0 0
        %1128 = vmatpush1.bf16.msra.mxu0 %v1098
        %1129 = vmatprep.subr.bf16.mxu0 0
        %1130 = vmatpush1.bf16.msra.mxu0 0
        %1131 = vmatprep.subr.bf16.mxu0 0
        %1132 = vmatpush1.bf16.msra.mxu0 0
        %1133 = vmatprep.subr.bf16.mxu0 0
        %1134 = vmatpush1.bf16.msra.mxu0 0
        %1135 = vmatprep.subr.bf16.mxu0 0
        %1136 = vmatpush1.bf16.msra.mxu0 0
        %1137 = vmatprep.subr.bf16.mxu0 0
        %1138 = vmatpush1.bf16.msra.mxu0 0
        %1139 = vmatprep.subr.bf16.mxu0 0
        %1140 = vmatpush1.bf16.msra.mxu0 0
        %1141 = vmatprep.subr.bf16.mxu0 0
        %1142 = vmatpush1.bf16.msra.mxu0 0
        %1143 = vmatprep.subr.bf16.mxu0 0
        %1144 = vmatpush1.bf16.msra.mxu0 0
        %1145 = vmatprep.subr.bf16.mxu0 0
        %1146 = vmatpush1.bf16.msra.mxu0 0
        %1147 = vmatprep.subr.bf16.mxu0 0
        %1148 = vmatpush1.bf16.msra.mxu0 0
        %1149 = vmatprep.subr.bf16.mxu0 0
        %1150 = vmatpush1.bf16.msra.mxu0 0
        %1151 = vmatprep.subr.bf16.mxu0 0
        %1152 = vmatpush1.bf16.msra.mxu0 0
        %1153 = vmatprep.subr.bf16.mxu0 0
        %1154 = vmatpush1.bf16.msra.mxu0 0
        %1155 = vmatprep.subr.bf16.mxu0 0
        %1156 = vmatpush1.bf16.msra.mxu0 0
        %1157 = vmatprep.mubr.bf16.mxu0 0
        %1158 = vmatmul.mubr.bf16.gmra.mrb[0].mxu0 %v1102
        %v1159 = vpop.f32.mrb[0].mxu0
        %v1160 = vadd.f32 0.0, %v1159
        %v1161 = vpop.f32.mrb[0].mxu0
        %v1162 = vpop.f32.mrb[0].mxu0
        %v1163 = vadd.f32 0.0, %v1162
        %v1164 = vpop.f32.mrb[0].mxu0
        %1165 = vmatprep.mubr.bf16.mxu0 0
        %1166 = vmatmul.mubr.bf16.gmra.mrb[0].mxu0 %v1105
        %v1167 = vpop.f32.mrb[0].mxu0
        %v1168 = vadd.f32 0.0, %v1167
        %v1169 = vpop.f32.mrb[0].mxu0
        %v1170 = vpop.f32.mrb[0].mxu0
        %v1171 = vadd.f32 0.0, %v1170
        %v1172 = vpop.f32.mrb[0].mxu0
        %1173 = vmatprep.mubr.bf16.mxu0 0
        %1174 = vmatmul.mubr.bf16.gmra.mrb[0].mxu0 %v1108
        %v1175 = vpop.f32.mrb[0].mxu0
        %v1176 = vadd.f32 0.0, %v1175
        %v1177 = vpop.f32.mrb[0].mxu0
        %v1178 = vpop.f32.mrb[0].mxu0
        %v1179 = vadd.f32 0.0, %v1178
        %v1180 = vpop.f32.mrb[0].mxu0
        %1181 = vmatprep.mubr.bf16.mxu0 0
        %1182 = vmatmul.mubr.bf16.gmra.mrb[0].mxu0 %v1111
        %v1183 = vpop.f32.mrb[0].mxu0
        %v1184 = vadd.f32 0.0, %v1183
        %v1185 = vpop.f32.mrb[0].mxu0
        %v1186 = vpop.f32.mrb[0].mxu0
        %v1187 = vadd.f32 0.0, %v1186
        %v1188 = vpop.f32.mrb[0].mxu0
        %1189 = vmatprep.mubr.bf16.mxu0 0
        %1190 = vmatmul.mubr.bf16.gmra.mrb[0].mxu0 %v1114
        %v1191 = vpop.f32.mrb[0].mxu0
        %v1192 = vadd.f32 0.0, %v1191
        %v1193 = vpop.f32.mrb[0].mxu0
        %v1194 = vpop.f32.mrb[0].mxu0
        %v1195 = vadd.f32 0.0, %v1194
        %v1196 = vpop.f32.mrb[0].mxu0
        %1197 = vmatprep.mubr.bf16.mxu0 0
        %1198 = vmatmul.mubr.bf16.gmra.mrb[0].mxu0 %v1117
        %v1199 = vpop.f32.mrb[0].mxu0
        %v1200 = vadd.f32 0.0, %v1199
        %v1201 = vpop.f32.mrb[0].mxu0
        %v1202 = vpop.f32.mrb[0].mxu0
        %v1203 = vadd.f32 0.0, %v1202
        %v1204 = vpop.f32.mrb[0].mxu0
        %1205 = vmatprep.mubr.bf16.mxu0 0
        %1206 = vmatmul.mubr.bf16.gmra.mrb[0].mxu0 %v1120
        %v1207 = vpop.f32.mrb[0].mxu0
        %v1208 = vadd.f32 0.0, %v1207
        %v1209 = vpop.f32.mrb[0].mxu0
        %v1210 = vpop.f32.mrb[0].mxu0
        %v1211 = vadd.f32 0.0, %v1210
        %v1212 = vpop.f32.mrb[0].mxu0
        %1213 = vmatprep.mubr.bf16.mxu0 0
        %1214 = vmatmul.mubr.bf16.gmra.mrb[0].mxu0 %v1123
        %v1215 = vpop.f32.mrb[0].mxu0
        %v1216 = vadd.f32 0.0, %v1215
        %v1217 = vpop.f32.mrb[0].mxu0
        %v1218 = vpop.f32.mrb[0].mxu0
        %v1219 = vadd.f32 0.0, %v1218
        %v1220 = vpop.f32.mrb[0].mxu0
        %1221 = vdwg.mxu0
        %v1222 = vadd.f32 %v876, %v1160
        %v1223 = vadd.f32 %v879, %v1163
        %v1224 = vadd.f32 %v884, %v1168
        %v1225 = vadd.f32 %v887, %v1171
        %v1226 = vadd.f32 %v892, %v1176
        %v1227 = vadd.f32 %v895, %v1179
        %v1228 = vadd.f32 %v900, %v1184
        %v1229 = vadd.f32 %v903, %v1187
        %v1230 = vadd.f32 %v908, %v1192
        %v1231 = vadd.f32 %v911, %v1195
        %v1232 = vadd.f32 %v916, %v1200
        %v1233 = vadd.f32 %v919, %v1203
        %v1234 = vadd.f32 %v924, %v1208
        %v1235 = vadd.f32 %v927, %v1211
        %v1236 = vadd.f32 %v932, %v1216
        %v1237 = vadd.f32 %v935, %v1219
        %v1238 = vmax.f32 %v1222, 0.0
        %v1239 = vmax.f32 %v1223, 0.0
        %v1240 = vmax.f32 %v1224, 0.0
        %v1241 = vmax.f32 %v1225, 0.0
        %v1242 = vmax.f32 %v1226, 0.0
        %v1243 = vmax.f32 %v1227, 0.0
        %v1244 = vmax.f32 %v1228, 0.0
        %v1245 = vmax.f32 %v1229, 0.0
        %v1246 = vmax.f32 %v1230, 0.0
        %v1247 = vmax.f32 %v1231, 0.0
        %v1248 = vmax.f32 %v1232, 0.0
        %v1249 = vmax.f32 %v1233, 0.0
        %v1250 = vmax.f32 %v1234, 0.0
        %v1251 = vmax.f32 %v1235, 0.0
        %v1252 = vmax.f32 %v1236, 0.0
        %v1253 = vmax.f32 %v1237, 0.0
        %vm1254 = vcmask 523264
        %1255 = vst.msk [vmem:[%s288] sm:$0xff] %vm1254, %v1238
        %1256 = vst.msk [vmem:[%s288 + $0x8] sm:$0xff] %vm1254, %v1239
        %1257 = vst.msk [vmem:[%s288 + $0x10] sm:$0xff] %vm1254, %v1240
        %1258 = vst.msk [vmem:[%s288 + $0x18] sm:$0xff] %vm1254, %v1241
        %1259 = vst.msk [vmem:[%s288 + $0x20] sm:$0xff] %vm1254, %v1242
        %1260 = vst.msk [vmem:[%s288 + $0x28] sm:$0xff] %vm1254, %v1243
        %1261 = vst.msk [vmem:[%s288 + $0x30] sm:$0xff] %vm1254, %v1244
        %1262 = vst.msk [vmem:[%s288 + $0x38] sm:$0xff] %vm1254, %v1245
        %1263 = vst.msk [vmem:[%s288 + $0x40] sm:$0xff] %vm1254, %v1246
        %1264 = vst.msk [vmem:[%s288 + $0x48] sm:$0xff] %vm1254, %v1247
        %1265 = vst.msk [vmem:[%s288 + $0x50] sm:$0xff] %vm1254, %v1248
        %1266 = vst.msk [vmem:[%s288 + $0x58] sm:$0xff] %vm1254, %v1249
        %1267 = vst.msk [vmem:[%s288 + $0x60] sm:$0xff] %vm1254, %v1250
        %1268 = vst.msk [vmem:[%s288 + $0x68] sm:$0xff] %vm1254, %v1251
        %1269 = vst.msk [vmem:[%s288 + $0x70] sm:$0xff] %vm1254, %v1252
        %1270 = vst.msk [vmem:[%s288 + $0x78] sm:$0xff] %vm1254, %v1253
        %s1271 = smul.u32 16, %s24
        %p1272 = scmp.lt.s32.totalorder %s23, 1
        %s1273 = scalar_select %p1272, %s23, 1
        %p1274 = scmp.lt.s32.totalorder %s1271, 15
        %s1275 = scalar_select %p1274, %s1271, 15
        %s1276 = smul.addr %s1273, 16
        %s1277 = sadd.s32 %s1275, %s1276
        %s1278 = smul.addr %s1277, 8
        %s1279 = scalar_lea.vmem %s4, %s1278
        // Predicated region
        $region45: #{tpu_custom_call.1} parent=35 // pred_check
          %p1280 = pneg %p152
        $region46: #{tpu_custom_call.1} parent=35 // pred_check_branch
          %1282 = sbr.rel (%p1280) target = $region48
        $region47: #{tpu_custom_call.1} parent=35 // pred_region
          %s1283 = smul.u32 16, %s24
        $region48: #{tpu_custom_call.1} parent=35 // pred_fallthru
          _
      $region36: #{tpu_custom_call.1} parent=5 // pred_fallthru
        _
      %p1284 = scmp.le.s32.totalorder 2, %s14
      // Predicated region
      $region49: #{tpu_custom_call.1} parent=5 // pred_check
        %p1285 = pneg %p1284
      $region50: #{tpu_custom_call.1} parent=5 // pred_check_branch
        %1287 = sbr.rel (%p1285) target = $region52
      $region51: #{tpu_custom_call.1} parent=5 // pred_region
        %s1288 = ssub.s32 %s14, 2
        // Predicated region
        $region53: #{tpu_custom_call.1} parent=51 // pred_check
          %p1289 = pneg %p158
        $region54: #{tpu_custom_call.1} parent=51 // pred_check_branch
          %1291 = sbr.rel (%p1289) target = $region56
        $region55: #{tpu_custom_call.1} parent=51 // pred_region
          %s1292 = smul.u32 16, %s26
          %p1293 = scmp.lt.s32.totalorder %s25, 1
          %s1294 = scalar_select %p1293, %s25, 1
          %p1295 = scmp.lt.s32.totalorder %s1292, 15
          %s1296 = scalar_select %p1295, %s1292, 15
          %s1297 = smul.addr %s1294, 16
          %s1298 = sadd.s32 %s1296, %s1297
          %s1299 = smul.addr %s1298, 8
          %s1300 = scalar_lea.vmem %s4, %s1299
        $region56: #{tpu_custom_call.1} parent=51 // pred_fallthru
          _
      $region52: #{tpu_custom_call.1} parent=5 // pred_fallthru
        _
    $region6: #{tpu_custom_call.1} parent=1 // loop_footer
      %s18 = sadd.s32 1, %s14
    $region7: #{tpu_custom_call.1} parent=1 // loop_footer_branch
      %13 = sbr.rel target = $region3
    $region8: #{tpu_custom_call.1} parent=1 // loop_exit
      _
    %1301 = vsyncpa [#allocation3], 1
    %s1302 = scalar_lea.sflag [#allocation3], 1
    %1303 = vsyncpa %s1302, 1
    %1304 = vsyncpa [#allocation5], 1

</llo_original>
